<compile_context>
chip_gen: v7x
topology: tpu7x:2x2x1
jax: 0.10.0
libtpu: 0.0.40
codegen_flags: <defaults>
</compile_context>

<pallas_src>
import functools

import jax
import jax.numpy as jnp
from jax.experimental import pallas as pl
from jax.experimental.pallas import tpu as pltpu


# ----------------------------- Pallas kernel ---------------------------------
def _convlstm_cell_kernel(wT_ref, bT_ref, pT_ref, cT_ref,
                          hT_out_ref, cT_out_ref, *, Hd):
    """One N-tile of the ConvLSTM cell.

    wT_ref : (4*Hd, K)      flattened conv weight, transposed (VMEM-resident)
    bT_ref : (4*Hd, 1)      conv bias
    pT_ref : (K, TILE_N)    im2col patches, transposed (lane-dense)
    cT_ref : (Hd, TILE_N)   current cell state, transposed (lane-dense)
    outputs: (Hd, TILE_N)   h_next^T, c_next^T (lane-dense stores)
    """
    # Single fused im2col matmul: (4*Hd, K) @ (K, TILE_N) on the MXU.
    # f32 operands with f32 accumulation to match the f32 reference over the
    # recurrence (bf16 inputs would be the next lever if tolerance allows).
    gates = jnp.dot(wT_ref[...], pT_ref[...],
                    preferred_element_type=jnp.float32)      # (4*Hd, TILE_N)
    gates = gates + bT_ref[...]                               # lane broadcast

    # Row (sublane) slices at multiples of 8 -> no relayout.
    i_g = jax.nn.sigmoid(gates[0 * Hd:1 * Hd, :])
    f_g = jax.nn.sigmoid(gates[1 * Hd:2 * Hd, :])
    o_g = jax.nn.sigmoid(gates[2 * Hd:3 * Hd, :])
    g_g = jnp.tanh(gates[3 * Hd:4 * Hd, :])

    c_next = f_g * cT_ref[...] + i_g * g_g
    hT_out_ref[...] = o_g * jnp.tanh(c_next)
    cT_out_ref[...] = c_next


def _pick_tile_n(n_pad):
    # n_pad is always a multiple of 128; choose the largest tile that divides
    # it (bounded so double-buffered im2col tiles stay well inside VMEM).
    for t in (2048, 1024, 512, 256, 128):
        if n_pad % t == 0:
            return t
    return n_pad  # unreachable: 128 always divides n_pad


def convlstm_cell_apply(x, h_cur, c_cur, wT, bT, *, kernel_size):
    """x: (B,H,W,Cin); h_cur, c_cur: (B,H,W,Hd). Returns (h_next, c_next)."""
    B, H, W, Cin = x.shape
    Hd = h_cur.shape[-1]
    kh, kw = kernel_size
    ph, pw = kh // 2, kw // 2
    Cc = Cin + Hd
    K = kh * kw * Cc
    n = B * H * W

    # ---- im2col in the wrapper (fused under jit with the pallas_call) -------
    comb = jnp.concatenate([x, h_cur], axis=-1)                  # (B,H,W,Cc)
    comb_pad = jnp.pad(comb, ((0, 0), (ph, ph), (pw, pw), (0, 0)))
    taps = [comb_pad[:, ky:ky + H, kx:kx + W, :]
            for ky in range(kh) for kx in range(kw)]             # each (B,H,W,Cc)
    p = jnp.stack(taps, axis=0)                                  # (kh*kw,B,H,W,Cc)
    pT = p.transpose(0, 4, 1, 2, 3).reshape(K, n)                # (K, n) lane-dense
    cT = c_cur.reshape(n, Hd).T                                  # (Hd, n) lane-dense

    # Pad n up to a multiple of 128 so every tile store is a full-lane vst.
    n_pad = ((n + 127) // 128) * 128
    if n_pad != n:
        pT = jnp.pad(pT, ((0, 0), (0, n_pad - n)))
        cT = jnp.pad(cT, ((0, 0), (0, n_pad - n)))

    tile = _pick_tile_n(n_pad)
    grid = (n_pad // tile,)

    kernel = functools.partial(_convlstm_cell_kernel, Hd=Hd)
    hT, cT_next = pl.pallas_call(
        kernel,
        out_shape=(jax.ShapeDtypeStruct((Hd, n_pad), jnp.float32),
                   jax.ShapeDtypeStruct((Hd, n_pad), jnp.float32)),
        grid=grid,
        in_specs=[
            pl.BlockSpec((4 * Hd, K), lambda j: (0, 0)),   # weights (resident)
            pl.BlockSpec((4 * Hd, 1), lambda j: (0, 0)),   # bias (resident)
            pl.BlockSpec((K, tile), lambda j: (0, j)),     # im2col patches tile
            pl.BlockSpec((Hd, tile), lambda j: (0, j)),    # cell state tile
        ],
        out_specs=(pl.BlockSpec((Hd, tile), lambda j: (0, j)),
                   pl.BlockSpec((Hd, tile), lambda j: (0, j))),
        compiler_params=pltpu.CompilerParams(
            dimension_semantics=("parallel",)),            # megacore on v7x
    )(wT, bT, pT, cT)

    h_next = hT[:, :n].T.reshape(B, H, W, Hd)
    c_next = cT_next[:, :n].T.reshape(B, H, W, Hd)
    return h_next, c_next


# ----------------------------- module wrapper ---------------------------------
class ConvLSTMCellPallas:
    """Mirrors ConvLSTM_Cell.forward(x, (h, c)) -> (h_next, c_next), NHWC."""

    def __init__(self, input_shape, input_dim, hidden_dim, kernel_size, key,
                 bias=True):
        self.height, self.width = input_shape
        self.input_dim = input_dim
        self.hidden_dim = hidden_dim
        self.kernel_size = kernel_size

        kh, kw = kernel_size
        Cc = input_dim + hidden_dim
        fan_in = Cc * kh * kw
        bound = 1.0 / (fan_in ** 0.5)     # PyTorch Conv2d default init scale
        kw_key, kb_key = jax.random.split(key)
        self.w_hwio = jax.random.uniform(kw_key, (kh, kw, Cc, 4 * hidden_dim),
                                         jnp.float32, -bound, bound)
        if bias:
            self.b = jax.random.uniform(kb_key, (4 * hidden_dim,),
                                        jnp.float32, -bound, bound)
        else:
            self.b = jnp.zeros((4 * hidden_dim,), jnp.float32)

        # Pre-flatten conv weight to the im2col layout ONCE (constant folding).
        self.wT = self.w_hwio.reshape(kh * kw * Cc, 4 * hidden_dim).T  # (4Hd,K)
        self.bT = self.b.reshape(4 * hidden_dim, 1)

        self._step = jax.jit(functools.partial(convlstm_cell_apply,
                                               kernel_size=kernel_size))

    def init_hidden(self, batch_size):
        shape = (batch_size, self.height, self.width, self.hidden_dim)
        return (jnp.zeros(shape, jnp.float32), jnp.zeros(shape, jnp.float32))

    def forward(self, x, hidden):
        h_cur, c_cur = hidden
        return self._step(x, h_cur, c_cur, self.wT, self.bT)


# ----------------------------- pure-JAX reference -----------------------------
def _cell_ref(x, h_cur, c_cur, w_hwio, b):
    dn = ('NHWC', 'HWIO', 'NHWC')
    comb = jnp.concatenate([x, h_cur], axis=-1)
    conv = jax.lax.conv_general_dilated(comb, w_hwio, (1, 1), 'SAME',
                                        dimension_numbers=dn)
    conv = conv + b.reshape(1, 1, 1, -1)
    cc_i, cc_f, cc_o, cc_g = jnp.split(conv, 4, axis=-1)
    i = jax.nn.sigmoid(cc_i)
    f = jax.nn.sigmoid(cc_f)
    o = jax.nn.sigmoid(cc_o)
    g = jnp.tanh(cc_g)
    c_next = f * c_cur + i * g
    h_next = o * jnp.tanh(c_next)
    return h_next, c_next


if __name__ == "__main__":
    B, Cin, Hd = 2, 4, 32
    HH, WW = 16, 16
    ksz = (3, 3)
    SEQ = 8

    key = jax.random.PRNGKey(0)
    key, kparam, kx = jax.random.split(key, 3)

    cell = ConvLSTMCellPallas(input_shape=(HH, WW), input_dim=Cin,
                              hidden_dim=Hd, kernel_size=ksz, key=kparam)

    xs = jax.random.normal(kx, (SEQ, B, HH, WW, Cin), jnp.float32)

    # run the recurrence through the Pallas kernel
    h, c = cell.init_hidden(B)
    for t in range(SEQ):
        h, c = cell.forward(xs[t], (h, c))
    h = jax.block_until_ready(h)
    c = jax.block_until_ready(c)

    # pure-JAX reference recurrence
    hr = jnp.zeros((B, HH, WW, Hd), jnp.float32)
    cr = jnp.zeros((B, HH, WW, Hd), jnp.float32)
    for t in range(SEQ):
        hr, cr = _cell_ref(xs[t], hr, cr, cell.w_hwio, cell.b)

    err_h = float(jnp.max(jnp.abs(h - hr)))
    err_c = float(jnp.max(jnp.abs(c - cr)))
    if err_h > 1e-3 or err_c > 1e-3:
        raise AssertionError(f"mismatch: max|dh|={err_h} max|dc|={err_c}")

    print("KERNEL_OK")
</pallas_src>

<mosaic_0001>
module attributes {stable_mosaic.version = 11 : i64} {
  func.func @_convlstm_cell_kernel(%arg0: i32, %arg1: memref<128x324xf32, #tpu.memory_space<vmem>>, %arg2: memref<128x1xf32, #tpu.memory_space<vmem>>, %arg3: memref<324x512xf32, #tpu.memory_space<vmem>>, %arg4: memref<32x512xf32, #tpu.memory_space<vmem>>, %arg5: memref<32x512xf32, #tpu.memory_space<vmem>>, %arg6: memref<32x512xf32, #tpu.memory_space<vmem>>) attributes {dimension_semantics = [#tpu.dimension_semantics<parallel>], iteration_bounds = array<i64: 1>, scalar_prefetch = 0 : i64, scratch_operands = 0 : i64, tpu.core_type = #tpu.core_type<tc>, window_params = [{pipeline_mode = #tpu.pipeline_mode<synchronous>, transform_indices = @transform_0, window_bounds = array<i64: 128, 324>}, {pipeline_mode = #tpu.pipeline_mode<synchronous>, transform_indices = @transform_1, window_bounds = array<i64: 128, 1>}, {transform_indices = @transform_2, window_bounds = array<i64: 324, 512>}, {transform_indices = @transform_3, window_bounds = array<i64: 32, 512>}, {transform_indices = @transform_4, window_bounds = array<i64: 32, 512>}, {transform_indices = @transform_5, window_bounds = array<i64: 32, 512>}]} {
    %c0 = arith.constant 0 : index
    %c0_0 = arith.constant 0 : index
    %0 = vector.load %arg1[%c0, %c0_0] : memref<128x324xf32, #tpu.memory_space<vmem>>, vector<128x324xf32>
    %c0_1 = arith.constant 0 : index
    %c0_2 = arith.constant 0 : index
    %1 = vector.load %arg3[%c0_1, %c0_2] : memref<324x512xf32, #tpu.memory_space<vmem>>, vector<324x512xf32>
    %cst = arith.constant dense<0.000000e+00> : vector<128x512xf32>
    %2 = tpu.matmul %0, %1, %cst {dimension_numbers = #tpu.dot_dimension_numbers<[1], [0], [0], [1], [0, 0, 1, 1], [], []>} : vector<128x324xf32>, vector<324x512xf32>, vector<128x512xf32> -> vector<128x512xf32>
    %c0_3 = arith.constant 0 : index
    %c0_4 = arith.constant 0 : index
    %3 = vector.load %arg2[%c0_3, %c0_4] : memref<128x1xf32, #tpu.memory_space<vmem>>, vector<128x1xf32>
    %4 = vector.broadcast %3 : vector<128x1xf32> to vector<128x512xf32>
    %5 = arith.addf %2, %4 : vector<128x512xf32>
    %6 = vector.extract_strided_slice %5 {offsets = [0, 0], sizes = [32, 512], strides = [1, 1]} : vector<128x512xf32> to vector<32x512xf32>
    %7 = arith.negf %6 : vector<32x512xf32>
    %8 = math.exp %7 : vector<32x512xf32>
    %cst_5 = arith.constant 1.000000e+00 : f32
    %9 = vector.broadcast %cst_5 : f32 to vector<32x512xf32>
    %10 = arith.addf %9, %8 : vector<32x512xf32>
    %11 = arith.divf %9, %10 : vector<32x512xf32>
    %12 = vector.extract_strided_slice %5 {offsets = [32, 0], sizes = [32, 512], strides = [1, 1]} : vector<128x512xf32> to vector<32x512xf32>
    %13 = arith.negf %12 : vector<32x512xf32>
    %14 = math.exp %13 : vector<32x512xf32>
    %cst_6 = arith.constant 1.000000e+00 : f32
    %15 = vector.broadcast %cst_6 : f32 to vector<32x512xf32>
    %16 = arith.addf %15, %14 : vector<32x512xf32>
    %17 = arith.divf %15, %16 : vector<32x512xf32>
    %18 = vector.extract_strided_slice %5 {offsets = [64, 0], sizes = [32, 512], strides = [1, 1]} : vector<128x512xf32> to vector<32x512xf32>
    %19 = arith.negf %18 : vector<32x512xf32>
    %20 = math.exp %19 : vector<32x512xf32>
    %cst_7 = arith.constant 1.000000e+00 : f32
    %21 = vector.broadcast %cst_7 : f32 to vector<32x512xf32>
    %22 = arith.addf %21, %20 : vector<32x512xf32>
    %23 = arith.divf %21, %22 : vector<32x512xf32>
    %24 = vector.extract_strided_slice %5 {offsets = [96, 0], sizes = [32, 512], strides = [1, 1]} : vector<128x512xf32> to vector<32x512xf32>
    %25 = math.tanh %24 : vector<32x512xf32>
    %c0_8 = arith.constant 0 : index
    %c0_9 = arith.constant 0 : index
    %26 = vector.load %arg4[%c0_8, %c0_9] : memref<32x512xf32, #tpu.memory_space<vmem>>, vector<32x512xf32>
    %27 = arith.mulf %17, %26 : vector<32x512xf32>
    %28 = arith.mulf %11, %25 : vector<32x512xf32>
    %29 = arith.addf %27, %28 : vector<32x512xf32>
    %30 = math.tanh %29 : vector<32x512xf32>
    %31 = arith.mulf %23, %30 : vector<32x512xf32>
    %c0_10 = arith.constant 0 : index
    %c0_11 = arith.constant 0 : index
    %32 = vector.load %arg5[%c0_10, %c0_11] : memref<32x512xf32, #tpu.memory_space<vmem>>, vector<32x512xf32>
    tpu.vector_store %arg5[%c0_10, %c0_11], %31 {strides = array<i32>} : memref<32x512xf32, #tpu.memory_space<vmem>>, vector<32x512xf32>,
    %c0_12 = arith.constant 0 : index
    %c0_13 = arith.constant 0 : index
    %33 = vector.load %arg6[%c0_12, %c0_13] : memref<32x512xf32, #tpu.memory_space<vmem>>, vector<32x512xf32>
    tpu.vector_store %arg6[%c0_12, %c0_13], %29 {strides = array<i32>} : memref<32x512xf32, #tpu.memory_space<vmem>>, vector<32x512xf32>,
    return
  }
  func.func @transform_0(%arg0: i32) -> (i32, i32) {
    %c0_i32 = arith.constant 0 : i32
    %c0_i32_0 = arith.constant 0 : i32
    %c0_i32_1 = arith.constant 0 : i32
    return %c0_i32, %c0_i32_0 : i32, i32
  }
  func.func @transform_1(%arg0: i32) -> (i32, i32) {
    %c0_i32 = arith.constant 0 : i32
    %c0_i32_0 = arith.constant 0 : i32
    %c0_i32_1 = arith.constant 0 : i32
    return %c0_i32, %c0_i32_0 : i32, i32
  }
  func.func @transform_2(%arg0: i32) -> (i32, i32) {
    %c0_i32 = arith.constant 0 : i32
    %c0_i32_0 = arith.constant 0 : i32
    return %c0_i32, %arg0 : i32, i32
  }
  func.func @transform_3(%arg0: i32) -> (i32, i32) {
    %c0_i32 = arith.constant 0 : i32
    %c0_i32_0 = arith.constant 0 : i32
    return %c0_i32, %arg0 : i32, i32
  }
  func.func @transform_4(%arg0: i32) -> (i32, i32) {
    %c0_i32 = arith.constant 0 : i32
    %c0_i32_0 = arith.constant 0 : i32
    return %c0_i32, %arg0 : i32, i32
  }
  func.func @transform_5(%arg0: i32) -> (i32, i32) {
    %c0_i32 = arith.constant 0 : i32
    %c0_i32_0 = arith.constant 0 : i32
    return %c0_i32, %arg0 : i32, i32
  }
}

</mosaic_0001>

<llo_original>
// kernel: convlstm_cell_apply.1
$region0: #{convlstm_cell_apply.1}
  #allocation0 [shape = 'u32[]', space=smem, size = 0x4, offset = 0x4, fixed_abs, tag = 'smem constant byte address 0x4 - core index']
  #allocation1 [shape = 'u32[144,128]{1,0:T(1,128)}', space=vmem, size = 0x12000, scoped, tag = 'internal scratch']
  %s0 = inlined_call_operand.vmem [shape: f32[128,324], index: 0, kind: input, shape index: {}]
  %s1 = inlined_call_operand.vmem [shape: f32[128,1], index: 1, kind: input, shape index: {}]
  %s2 = inlined_call_operand.vmem [shape: f32[324,512], index: 2, kind: input, shape index: {}]
  %s3 = inlined_call_operand.vmem [shape: f32[32,512], index: 3, kind: input, shape index: {}]
  %s4 = inlined_call_operand.vmem [shape: f32[32,512], index: 4, kind: output, shape index: {0}]
  %s5 = inlined_call_operand.vmem [shape: f32[32,512], index: 5, kind: output, shape index: {1}]
  %6 = xla_tuple %s4, %s5
  %s7 = sld [smem:[#allocation0]]
  $region34: #{convlstm_cell_apply.1} parent=0
    _
  %s9 = ssub.s32 1, %s7
  %s10 = scalar_select 0, %s9, %s7
  // Predicated region
  $region2: #{convlstm_cell_apply.1} parent=0 // pred_check
    _
  $region3: #{convlstm_cell_apply.1} parent=0 // pred_check_branch
    %12 = sbr.rel (0) target = $region5
  $region4: #{convlstm_cell_apply.1} parent=0 // pred_region
    _
  $region5: #{convlstm_cell_apply.1} parent=0 // pred_fallthru
    _
  // Predicated region
  $region6: #{convlstm_cell_apply.1} parent=0 // pred_check
    _
  $region7: #{convlstm_cell_apply.1} parent=0 // pred_check_branch
    %14 = sbr.rel (0) target = $region9
  $region8: #{convlstm_cell_apply.1} parent=0 // pred_region
    _
  $region9: #{convlstm_cell_apply.1} parent=0 // pred_fallthru
    _
  // Predicated region
  $region10: #{convlstm_cell_apply.1} parent=0 // pred_check
    _
  $region11: #{convlstm_cell_apply.1} parent=0 // pred_check_branch
    %16 = sbr.rel (0) target = $region13
  $region12: #{convlstm_cell_apply.1} parent=0 // pred_region
    _
  $region13: #{convlstm_cell_apply.1} parent=0 // pred_fallthru
    _
  // Predicated region
  $region14: #{convlstm_cell_apply.1} parent=0 // pred_check
    _
  $region15: #{convlstm_cell_apply.1} parent=0 // pred_check_branch
    %18 = sbr.rel (0) target = $region17
  $region16: #{convlstm_cell_apply.1} parent=0 // pred_region
    _
  $region17: #{convlstm_cell_apply.1} parent=0 // pred_fallthru
    _
  %v19 = vld [vmem:[%s0] sm:$0xff]
  %v20 = vld [vmem:[%s0 + $0x8] sm:$0xff]
  %v21 = vld [vmem:[%s0 + $0x10] sm:$0xff]
  %v22 = vld [vmem:[%s0 + $0x18] sm:$0xff]
  %v23 = vld [vmem:[%s0 + $0x20] sm:$0xff]
  %v24 = vld [vmem:[%s0 + $0x28] sm:$0xff]
  %v25 = vld [vmem:[%s0 + $0x30] sm:$0xff]
  %v26 = vld [vmem:[%s0 + $0x38] sm:$0xff]
  %v27 = vld [vmem:[%s0 + $0x40] sm:$0xff]
  %v28 = vld [vmem:[%s0 + $0x48] sm:$0xff]
  %v29 = vld [vmem:[%s0 + $0x50] sm:$0xff]
  %v30 = vld [vmem:[%s0 + $0x58] sm:$0xff]
  %v31 = vld [vmem:[%s0 + $0x60] sm:$0xff]
  %v32 = vld [vmem:[%s0 + $0x68] sm:$0xff]
  %v33 = vld [vmem:[%s0 + $0x70] sm:$0xff]
  %v34 = vld [vmem:[%s0 + $0x78] sm:$0xff]
  %v35 = vld [vmem:[%s0 + $0x80] sm:$0xff]
  %v36 = vld [vmem:[%s0 + $0x88] sm:$0xff]
  %v37 = vld [vmem:[%s0 + $0x90] sm:$0xff]
  %v38 = vld [vmem:[%s0 + $0x98] sm:$0xff]
  %v39 = vld [vmem:[%s0 + $0xa0] sm:$0xff]
  %v40 = vld [vmem:[%s0 + $0xa8] sm:$0xff]
  %v41 = vld [vmem:[%s0 + $0xb0] sm:$0xff]
  %v42 = vld [vmem:[%s0 + $0xb8] sm:$0xff]
  %v43 = vld [vmem:[%s0 + $0xc0] sm:$0xff]
  %v44 = vld [vmem:[%s0 + $0xc8] sm:$0xff]
  %v45 = vld [vmem:[%s0 + $0xd0] sm:$0xff]
  %v46 = vld [vmem:[%s0 + $0xd8] sm:$0xff]
  %v47 = vld [vmem:[%s0 + $0xe0] sm:$0xff]
  %v48 = vld [vmem:[%s0 + $0xe8] sm:$0xff]
  %v49 = vld [vmem:[%s0 + $0xf0] sm:$0xff]
  %v50 = vld [vmem:[%s0 + $0xf8] sm:$0xff]
  %v51 = vld [vmem:[%s0 + $0x100] sm:$0xff]
  %v52 = vld [vmem:[%s0 + $0x108] sm:$0xff]
  %v53 = vld [vmem:[%s0 + $0x110] sm:$0xff]
  %v54 = vld [vmem:[%s0 + $0x118] sm:$0xff]
  %v55 = vld [vmem:[%s0 + $0x120] sm:$0xff]
  %v56 = vld [vmem:[%s0 + $0x128] sm:$0xff]
  %v57 = vld [vmem:[%s0 + $0x130] sm:$0xff]
  %v58 = vld [vmem:[%s0 + $0x138] sm:$0xff]
  %v59 = vld [vmem:[%s0 + $0x140] sm:$0xff]
  %v60 = vld [vmem:[%s0 + $0x148] sm:$0xff]
  %v61 = vld [vmem:[%s0 + $0x150] sm:$0xff]
  %v62 = vld [vmem:[%s0 + $0x158] sm:$0xff]
  %v63 = vld [vmem:[%s0 + $0x160] sm:$0xff]
  %v64 = vld [vmem:[%s0 + $0x168] sm:$0xff]
  %v65 = vld [vmem:[%s0 + $0x170] sm:$0xff]
  %v66 = vld [vmem:[%s0 + $0x178] sm:$0xff]
  %v67 = vld [vmem:[%s2] sm:$0xff]
  %v68 = vld [vmem:[%s2 + $0x8] sm:$0xff]
  %v69 = vld [vmem:[%s2 + $0x10] sm:$0xff]
  %v70 = vld [vmem:[%s2 + $0x18] sm:$0xff]
  %v71 = vld [vmem:[%s2 + $0x20] sm:$0xff]
  %v72 = vld [vmem:[%s2 + $0x28] sm:$0xff]
  %v73 = vld [vmem:[%s2 + $0x30] sm:$0xff]
  %v74 = vld [vmem:[%s2 + $0x38] sm:$0xff]
  %v75 = vld [vmem:[%s2 + $0x40] sm:$0xff]
  %v76 = vld [vmem:[%s2 + $0x48] sm:$0xff]
  %v77 = vld [vmem:[%s2 + $0x50] sm:$0xff]
  %v78 = vld [vmem:[%s2 + $0x58] sm:$0xff]
  %v79 = vld [vmem:[%s2 + $0x60] sm:$0xff]
  %v80 = vld [vmem:[%s2 + $0x68] sm:$0xff]
  %v81 = vld [vmem:[%s2 + $0x70] sm:$0xff]
  %v82 = vld [vmem:[%s2 + $0x78] sm:$0xff]
  %v83 = vld [vmem:[%s2 + $0x80] sm:$0xff]
  %v84 = vld [vmem:[%s2 + $0x88] sm:$0xff]
  %v85 = vld [vmem:[%s2 + $0x90] sm:$0xff]
  %v86 = vld [vmem:[%s2 + $0x98] sm:$0xff]
  %v87 = vld [vmem:[%s2 + $0xa0] sm:$0xff]
  %v88 = vld [vmem:[%s2 + $0xa8] sm:$0xff]
  %v89 = vld [vmem:[%s2 + $0xb0] sm:$0xff]
  %v90 = vld [vmem:[%s2 + $0xb8] sm:$0xff]
  %v91 = vld [vmem:[%s2 + $0xc0] sm:$0xff]
  %v92 = vld [vmem:[%s2 + $0xc8] sm:$0xff]
  %v93 = vld [vmem:[%s2 + $0xd0] sm:$0xff]
  %v94 = vld [vmem:[%s2 + $0xd8] sm:$0xff]
  %v95 = vld [vmem:[%s2 + $0xe0] sm:$0xff]
  %v96 = vld [vmem:[%s2 + $0xe8] sm:$0xff]
  %v97 = vld [vmem:[%s2 + $0xf0] sm:$0xff]
  %v98 = vld [vmem:[%s2 + $0xf8] sm:$0xff]
  %v99 = vld [vmem:[%s2 + $0x100] sm:$0xff]
  %v100 = vld [vmem:[%s2 + $0x108] sm:$0xff]
  %v101 = vld [vmem:[%s2 + $0x110] sm:$0xff]
  %v102 = vld [vmem:[%s2 + $0x118] sm:$0xff]
  %v103 = vld [vmem:[%s2 + $0x120] sm:$0xff]
  %v104 = vld [vmem:[%s2 + $0x128] sm:$0xff]
  %v105 = vld [vmem:[%s2 + $0x130] sm:$0xff]
  %v106 = vld [vmem:[%s2 + $0x138] sm:$0xff]
  %v107 = vld [vmem:[%s2 + $0x140] sm:$0xff]
  %v108 = vld [vmem:[%s2 + $0x148] sm:$0xff]
  %v109 = vld [vmem:[%s2 + $0x150] sm:$0xff]
  %v110 = vld [vmem:[%s2 + $0x158] sm:$0xff]
  %v111 = vld [vmem:[%s2 + $0x160] sm:$0xff]
  %v112 = vld [vmem:[%s2 + $0x168] sm:$0xff]
  %v113 = vld [vmem:[%s2 + $0x170] sm:$0xff]
  %v114 = vld [vmem:[%s2 + $0x178] sm:$0xff]
  %v115 = vld [vmem:[%s2 + $0x180] sm:$0xff]
  %v116 = vld [vmem:[%s2 + $0x188] sm:$0xff]
  %v117 = vld [vmem:[%s2 + $0x190] sm:$0xff]
  %v118 = vld [vmem:[%s2 + $0x198] sm:$0xff]
  %v119 = vld [vmem:[%s2 + $0x1a0] sm:$0xff]
  %v120 = vld [vmem:[%s2 + $0x1a8] sm:$0xff]
  %v121 = vld [vmem:[%s2 + $0x1b0] sm:$0xff]
  %v122 = vld [vmem:[%s2 + $0x1b8] sm:$0xff]
  %v123 = vld [vmem:[%s2 + $0x1c0] sm:$0xff]
  %v124 = vld [vmem:[%s2 + $0x1c8] sm:$0xff]
  %v125 = vld [vmem:[%s2 + $0x1d0] sm:$0xff]
  %v126 = vld [vmem:[%s2 + $0x1d8] sm:$0xff]
  %v127 = vld [vmem:[%s2 + $0x1e0] sm:$0xff]
  %v128 = vld [vmem:[%s2 + $0x1e8] sm:$0xff]
  %v129 = vld [vmem:[%s2 + $0x1f0] sm:$0xff]
  %v130 = vld [vmem:[%s2 + $0x1f8] sm:$0xff]
  %v131 = vld [vmem:[%s2 + $0x200] sm:$0xff]
  %v132 = vld [vmem:[%s2 + $0x208] sm:$0xff]
  %v133 = vld [vmem:[%s2 + $0x210] sm:$0xff]
  %v134 = vld [vmem:[%s2 + $0x218] sm:$0xff]
  %v135 = vld [vmem:[%s2 + $0x220] sm:$0xff]
  %v136 = vld [vmem:[%s2 + $0x228] sm:$0xff]
  %v137 = vld [vmem:[%s2 + $0x230] sm:$0xff]
  %v138 = vld [vmem:[%s2 + $0x238] sm:$0xff]
  %v139 = vld [vmem:[%s2 + $0x240] sm:$0xff]
  %v140 = vld [vmem:[%s2 + $0x248] sm:$0xff]
  %v141 = vld [vmem:[%s2 + $0x250] sm:$0xff]
  %v142 = vld [vmem:[%s2 + $0x258] sm:$0xff]
  %v143 = vld [vmem:[%s2 + $0x260] sm:$0xff]
  %v144 = vld [vmem:[%s2 + $0x268] sm:$0xff]
  %v145 = vld [vmem:[%s2 + $0x270] sm:$0xff]
  %v146 = vld [vmem:[%s2 + $0x278] sm:$0xff]
  %v147 = vld [vmem:[%s2 + $0x280] sm:$0xff]
  %v148 = vld [vmem:[%s2 + $0x288] sm:$0xff]
  %v149 = vld [vmem:[%s2 + $0x290] sm:$0xff]
  %v150 = vld [vmem:[%s2 + $0x298] sm:$0xff]
  %v151 = vld [vmem:[%s2 + $0x2a0] sm:$0xff]
  %v152 = vld [vmem:[%s2 + $0x2a8] sm:$0xff]
  %v153 = vld [vmem:[%s2 + $0x2b0] sm:$0xff]
  %v154 = vld [vmem:[%s2 + $0x2b8] sm:$0xff]
  %v155 = vld [vmem:[%s2 + $0x2c0] sm:$0xff]
  %v156 = vld [vmem:[%s2 + $0x2c8] sm:$0xff]
  %v157 = vld [vmem:[%s2 + $0x2d0] sm:$0xff]
  %v158 = vld [vmem:[%s2 + $0x2d8] sm:$0xff]
  %v159 = vld [vmem:[%s2 + $0x2e0] sm:$0xff]
  %v160 = vld [vmem:[%s2 + $0x2e8] sm:$0xff]
  %v161 = vld [vmem:[%s2 + $0x2f0] sm:$0xff]
  %v162 = vld [vmem:[%s2 + $0x2f8] sm:$0xff]
  %v163 = vld [vmem:[%s2 + $0x300] sm:$0xff]
  %v164 = vld [vmem:[%s2 + $0x308] sm:$0xff]
  %v165 = vld [vmem:[%s2 + $0x310] sm:$0xff]
  %v166 = vld [vmem:[%s2 + $0x318] sm:$0xff]
  %v167 = vld [vmem:[%s2 + $0x320] sm:$0xff]
  %v168 = vld [vmem:[%s2 + $0x328] sm:$0xff]
  %v169 = vld [vmem:[%s2 + $0x330] sm:$0xff]
  %v170 = vld [vmem:[%s2 + $0x338] sm:$0xff]
  %v171 = vld [vmem:[%s2 + $0x340] sm:$0xff]
  %v172 = vld [vmem:[%s2 + $0x348] sm:$0xff]
  %v173 = vld [vmem:[%s2 + $0x350] sm:$0xff]
  %v174 = vld [vmem:[%s2 + $0x358] sm:$0xff]
  %v175 = vld [vmem:[%s2 + $0x360] sm:$0xff]
  %v176 = vld [vmem:[%s2 + $0x368] sm:$0xff]
  %v177 = vld [vmem:[%s2 + $0x370] sm:$0xff]
  %v178 = vld [vmem:[%s2 + $0x378] sm:$0xff]
  %v179 = vld [vmem:[%s2 + $0x380] sm:$0xff]
  %v180 = vld [vmem:[%s2 + $0x388] sm:$0xff]
  %v181 = vld [vmem:[%s2 + $0x390] sm:$0xff]
  %v182 = vld [vmem:[%s2 + $0x398] sm:$0xff]
  %v183 = vld [vmem:[%s2 + $0x3a0] sm:$0xff]
  %v184 = vld [vmem:[%s2 + $0x3a8] sm:$0xff]
  %v185 = vld [vmem:[%s2 + $0x3b0] sm:$0xff]
  %v186 = vld [vmem:[%s2 + $0x3b8] sm:$0xff]
  %v187 = vld [vmem:[%s2 + $0x3c0] sm:$0xff]
  %v188 = vld [vmem:[%s2 + $0x3c8] sm:$0xff]
  %v189 = vld [vmem:[%s2 + $0x3d0] sm:$0xff]
  %v190 = vld [vmem:[%s2 + $0x3d8] sm:$0xff]
  %v191 = vld [vmem:[%s2 + $0x3e0] sm:$0xff]
  %v192 = vld [vmem:[%s2 + $0x3e8] sm:$0xff]
  %v193 = vld [vmem:[%s2 + $0x3f0] sm:$0xff]
  %v194 = vld [vmem:[%s2 + $0x3f8] sm:$0xff]
  %v195 = vld [vmem:[%s2 + $0x400] sm:$0xff]
  %v196 = vld [vmem:[%s2 + $0x408] sm:$0xff]
  %v197 = vld [vmem:[%s2 + $0x410] sm:$0xff]
  %v198 = vld [vmem:[%s2 + $0x418] sm:$0xff]
  %v199 = vld [vmem:[%s2 + $0x420] sm:$0xff]
  %v200 = vld [vmem:[%s2 + $0x428] sm:$0xff]
  %v201 = vld [vmem:[%s2 + $0x430] sm:$0xff]
  %v202 = vld [vmem:[%s2 + $0x438] sm:$0xff]
  %v203 = vld [vmem:[%s2 + $0x440] sm:$0xff]
  %v204 = vld [vmem:[%s2 + $0x448] sm:$0xff]
  %v205 = vld [vmem:[%s2 + $0x450] sm:$0xff]
  %v206 = vld [vmem:[%s2 + $0x458] sm:$0xff]
  %v207 = vld [vmem:[%s2 + $0x460] sm:$0xff]
  %v208 = vld [vmem:[%s2 + $0x468] sm:$0xff]
  %v209 = vld [vmem:[%s2 + $0x470] sm:$0xff]
  %v210 = vld [vmem:[%s2 + $0x478] sm:$0xff]
  %v211 = vld [vmem:[%s2 + $0x480] sm:$0xff]
  %v212 = vld [vmem:[%s2 + $0x488] sm:$0xff]
  %v213 = vld [vmem:[%s2 + $0x490] sm:$0xff]
  %v214 = vld [vmem:[%s2 + $0x498] sm:$0xff]
  %v215 = vld [vmem:[%s2 + $0x4a0] sm:$0xff]
  %v216 = vld [vmem:[%s2 + $0x4a8] sm:$0xff]
  %v217 = vld [vmem:[%s2 + $0x4b0] sm:$0xff]
  %v218 = vld [vmem:[%s2 + $0x4b8] sm:$0xff]
  %v219 = vld [vmem:[%s2 + $0x4c0] sm:$0xff]
  %v220 = vld [vmem:[%s2 + $0x4c8] sm:$0xff]
  %v221 = vld [vmem:[%s2 + $0x4d0] sm:$0xff]
  %v222 = vld [vmem:[%s2 + $0x4d8] sm:$0xff]
  %v223 = vld [vmem:[%s2 + $0x4e0] sm:$0xff]
  %v224 = vld [vmem:[%s2 + $0x4e8] sm:$0xff]
  %v225 = vld [vmem:[%s2 + $0x4f0] sm:$0xff]
  %v226 = vld [vmem:[%s2 + $0x4f8] sm:$0xff]
  %v227 = vld [vmem:[%s2 + $0x500] sm:$0xf]
  %v228 = vld [vmem:[%s2 + $0x508] sm:$0xf]
  %v229 = vld [vmem:[%s2 + $0x510] sm:$0xf]
  %v230 = vld [vmem:[%s2 + $0x518] sm:$0xf]
  %v231 = vld [vmem:[%s1] sm:$0xff]
  %v232 = vld [vmem:[%s1 + $0x8] sm:$0xff]
  %v233 = vld [vmem:[%s1 + $0x10] sm:$0xff]
  %v234 = vld [vmem:[%s1 + $0x18] sm:$0xff]
  %v235 = vld [vmem:[%s1 + $0x20] sm:$0xff]
  %v236 = vld [vmem:[%s1 + $0x28] sm:$0xff]
  %v237 = vld [vmem:[%s1 + $0x30] sm:$0xff]
  %v238 = vld [vmem:[%s1 + $0x38] sm:$0xff]
  %v239 = vld [vmem:[%s1 + $0x40] sm:$0xff]
  %v240 = vld [vmem:[%s1 + $0x48] sm:$0xff]
  %v241 = vld [vmem:[%s1 + $0x50] sm:$0xff]
  %v242 = vld [vmem:[%s1 + $0x58] sm:$0xff]
  %v243 = vld [vmem:[%s1 + $0x60] sm:$0xff]
  %v244 = vld [vmem:[%s1 + $0x68] sm:$0xff]
  %v245 = vld [vmem:[%s1 + $0x70] sm:$0xff]
  %v246 = vld [vmem:[%s1 + $0x78] sm:$0xff]
  %248 = vset.pattern.permute.xlu0 0
  %249 = vperm.xlu0 %248, %v231
  %v250 = vpop.permute.xlu0 %249
  %253 = vset.pattern.permute.xlu0 0
  %254 = vperm.xlu0 %253, %v232
  %v255 = vpop.permute.xlu0 %254
  %258 = vset.pattern.permute.xlu0 0
  %259 = vperm.xlu0 %258, %v233
  %v260 = vpop.permute.xlu0 %259
  %263 = vset.pattern.permute.xlu0 0
  %264 = vperm.xlu0 %263, %v234
  %v265 = vpop.permute.xlu0 %264
  %268 = vset.pattern.permute.xlu0 0
  %269 = vperm.xlu0 %268, %v235
  %v270 = vpop.permute.xlu0 %269
  %273 = vset.pattern.permute.xlu0 0
  %274 = vperm.xlu0 %273, %v236
  %v275 = vpop.permute.xlu0 %274
  %278 = vset.pattern.permute.xlu0 0
  %279 = vperm.xlu0 %278, %v237
  %v280 = vpop.permute.xlu0 %279
  %283 = vset.pattern.permute.xlu0 0
  %284 = vperm.xlu0 %283, %v238
  %v285 = vpop.permute.xlu0 %284
  %288 = vset.pattern.permute.xlu0 0
  %289 = vperm.xlu0 %288, %v239
  %v290 = vpop.permute.xlu0 %289
  %293 = vset.pattern.permute.xlu0 0
  %294 = vperm.xlu0 %293, %v240
  %v295 = vpop.permute.xlu0 %294
  %298 = vset.pattern.permute.xlu0 0
  %299 = vperm.xlu0 %298, %v241
  %v300 = vpop.permute.xlu0 %299
  %303 = vset.pattern.permute.xlu0 0
  %304 = vperm.xlu0 %303, %v242
  %v305 = vpop.permute.xlu0 %304
  %308 = vset.pattern.permute.xlu0 0
  %309 = vperm.xlu0 %308, %v243
  %v310 = vpop.permute.xlu0 %309
  %313 = vset.pattern.permute.xlu0 0
  %314 = vperm.xlu0 %313, %v244
  %v315 = vpop.permute.xlu0 %314
  %318 = vset.pattern.permute.xlu0 0
  %319 = vperm.xlu0 %318, %v245
  %v320 = vpop.permute.xlu0 %319
  %323 = vset.pattern.permute.xlu0 0
  %324 = vperm.xlu0 %323, %v246
  %v325 = vpop.permute.xlu0 %324
  %vm327 = vcmask 556032
  %v329 = vsel %vm327, %v21, 0
  %v332 = vsel %vm327, %v24, 0
  %v335 = vsel %vm327, %v27, 0
  %v338 = vsel %vm327, %v30, 0
  %v341 = vsel %vm327, %v33, 0
  %v344 = vsel %vm327, %v36, 0
  %v347 = vsel %vm327, %v39, 0
  %v350 = vsel %vm327, %v42, 0
  %v353 = vsel %vm327, %v45, 0
  %v356 = vsel %vm327, %v48, 0
  %v359 = vsel %vm327, %v51, 0
  %v362 = vsel %vm327, %v54, 0
  %v365 = vsel %vm327, %v57, 0
  %v368 = vsel %vm327, %v60, 0
  %v371 = vsel %vm327, %v63, 0
  %v374 = vsel %vm327, %v66, 0
  %vm376 = vcmask 1043456
  %v378 = vsel %vm376, %v227, 0
  %v381 = vsel %vm376, %v228, 0
  %v384 = vsel %vm376, %v229, 0
  %v387 = vsel %vm376, %v230, 0
  %389 = vmatprep.subr.mxu0 %v68
  %390 = vmatpush1.msra.mxu0 %v67
  %391 = vmatprep.subr.mxu0 %v72
  %392 = vmatpush1.msra.mxu0 %v71
  %393 = vmatprep.subr.mxu0 %v76
  %394 = vmatpush1.msra.mxu0 %v75
  %395 = vmatprep.subr.mxu0 %v80
  %396 = vmatpush1.msra.mxu0 %v79
  %397 = vmatprep.subr.mxu0 %v84
  %398 = vmatpush1.msra.mxu0 %v83
  %399 = vmatprep.subr.mxu0 %v88
  %400 = vmatpush1.msra.mxu0 %v87
  %401 = vmatprep.subr.mxu0 %v92
  %402 = vmatpush1.msra.mxu0 %v91
  %403 = vmatprep.subr.mxu0 %v96
  %404 = vmatpush1.msra.mxu0 %v95
  %405 = vmatprep.subr.mxu0 %v100
  %406 = vmatpush1.msra.mxu0 %v99
  %407 = vmatprep.subr.mxu0 %v104
  %408 = vmatpush1.msra.mxu0 %v103
  %409 = vmatprep.subr.mxu0 %v108
  %410 = vmatpush1.msra.mxu0 %v107
  %411 = vmatprep.subr.mxu0 %v112
  %412 = vmatpush1.msra.mxu0 %v111
  %413 = vmatprep.subr.mxu0 %v116
  %414 = vmatpush1.msra.mxu0 %v115
  %415 = vmatprep.subr.mxu0 %v120
  %416 = vmatpush1.msra.mxu0 %v119
  %417 = vmatprep.subr.mxu0 %v124
  %418 = vmatpush1.msra.mxu0 %v123
  %419 = vmatprep.subr.mxu0 %v128
  %420 = vmatpush1.msra.mxu0 %v127
  %421 = vmatprep.subr.mxu0 %v132
  %422 = vmatpush1.msra.mxu0 %v131
  %423 = vmatprep.subr.mxu0 %v136
  %424 = vmatpush1.msra.mxu0 %v135
  %425 = vmatprep.subr.mxu0 %v140
  %426 = vmatpush1.msra.mxu0 %v139
  %427 = vmatprep.subr.mxu0 %v144
  %428 = vmatpush1.msra.mxu0 %v143
  %429 = vmatprep.subr.mxu0 %v148
  %430 = vmatpush1.msra.mxu0 %v147
  %431 = vmatprep.subr.mxu0 %v152
  %432 = vmatpush1.msra.mxu0 %v151
  %433 = vmatprep.subr.mxu0 %v156
  %434 = vmatpush1.msra.mxu0 %v155
  %435 = vmatprep.subr.mxu0 %v160
  %436 = vmatpush1.msra.mxu0 %v159
  %437 = vmatprep.subr.mxu0 %v164
  %438 = vmatpush1.msra.mxu0 %v163
  %439 = vmatprep.subr.mxu0 %v168
  %440 = vmatpush1.msra.mxu0 %v167
  %441 = vmatprep.subr.mxu0 %v172
  %442 = vmatpush1.msra.mxu0 %v171
  %443 = vmatprep.subr.mxu0 %v176
  %444 = vmatpush1.msra.mxu0 %v175
  %445 = vmatprep.subr.mxu0 %v180
  %446 = vmatpush1.msra.mxu0 %v179
  %447 = vmatprep.subr.mxu0 %v184
  %448 = vmatpush1.msra.mxu0 %v183
  %449 = vmatprep.subr.mxu0 %v188
  %450 = vmatpush1.msra.mxu0 %v187
  %451 = vmatprep.subr.mxu0 %v192
  %452 = vmatpush1.msra.mxu0 %v191
  %453 = vmatprep.mubr.f32.mxu0 %v20
  %454 = vmatmul.mubr.f32.gmra.mrb[0].mxu0 %v19
  %v455 = vpop.f32.mrb[0].mxu0
  %v456 = vadd.f32 %v250, %v455
  %v457 = vpop.f32.mrb[0].mxu0
  %v458 = vadd.f32 %v250, %v457
  %459 = vmatprep.mubr.f32.mxu0 %v23
  %460 = vmatmul.mubr.f32.gmra.mrb[0].mxu0 %v22
  %v461 = vpop.f32.mrb[0].mxu0
  %v462 = vadd.f32 %v255, %v461
  %v463 = vpop.f32.mrb[0].mxu0
  %v464 = vadd.f32 %v255, %v463
  %465 = vmatprep.mubr.f32.mxu0 %v26
  %466 = vmatmul.mubr.f32.gmra.mrb[0].mxu0 %v25
  %v467 = vpop.f32.mrb[0].mxu0
  %v468 = vadd.f32 %v260, %v467
  %v469 = vpop.f32.mrb[0].mxu0
  %v470 = vadd.f32 %v260, %v469
  %471 = vmatprep.mubr.f32.mxu0 %v29
  %472 = vmatmul.mubr.f32.gmra.mrb[0].mxu0 %v28
  %v473 = vpop.f32.mrb[0].mxu0
  %v474 = vadd.f32 %v265, %v473
  %v475 = vpop.f32.mrb[0].mxu0
  %v476 = vadd.f32 %v265, %v475
  %477 = vmatprep.mubr.f32.mxu0 %v32
  %478 = vmatmul.mubr.f32.gmra.mrb[0].mxu0 %v31
  %v479 = vpop.f32.mrb[0].mxu0
  %v480 = vadd.f32 %v270, %v479
  %v481 = vpop.f32.mrb[0].mxu0
  %v482 = vadd.f32 %v270, %v481
  %483 = vmatprep.mubr.f32.mxu0 %v35
  %484 = vmatmul.mubr.f32.gmra.mrb[0].mxu0 %v34
  %v485 = vpop.f32.mrb[0].mxu0
  %v486 = vadd.f32 %v275, %v485
  %v487 = vpop.f32.mrb[0].mxu0
  %v488 = vadd.f32 %v275, %v487
  %489 = vmatprep.mubr.f32.mxu0 %v38
  %490 = vmatmul.mubr.f32.gmra.mrb[0].mxu0 %v37
  %v491 = vpop.f32.mrb[0].mxu0
  %v492 = vadd.f32 %v280, %v491
  %v493 = vpop.f32.mrb[0].mxu0
  %v494 = vadd.f32 %v280, %v493
  %495 = vmatprep.mubr.f32.mxu0 %v41
  %496 = vmatmul.mubr.f32.gmra.mrb[0].mxu0 %v40
  %v497 = vpop.f32.mrb[0].mxu0
  %v498 = vadd.f32 %v285, %v497
  %v499 = vpop.f32.mrb[0].mxu0
  %v500 = vadd.f32 %v285, %v499
  %501 = vmatprep.mubr.f32.mxu0 %v44
  %502 = vmatmul.mubr.f32.gmra.mrb[0].mxu0 %v43
  %v503 = vpop.f32.mrb[0].mxu0
  %v504 = vadd.f32 %v290, %v503
  %v505 = vpop.f32.mrb[0].mxu0
  %v506 = vadd.f32 %v290, %v505
  %507 = vmatprep.mubr.f32.mxu0 %v47
  %508 = vmatmul.mubr.f32.gmra.mrb[0].mxu0 %v46
  %v509 = vpop.f32.mrb[0].mxu0
  %v510 = vadd.f32 %v295, %v509
  %v511 = vpop.f32.mrb[0].mxu0
  %v512 = vadd.f32 %v295, %v511
  %513 = vmatprep.mubr.f32.mxu0 %v50
  %514 = vmatmul.mubr.f32.gmra.mrb[0].mxu0 %v49
  %v515 = vpop.f32.mrb[0].mxu0
  %v516 = vadd.f32 %v300, %v515
  %v517 = vpop.f32.mrb[0].mxu0
  %v518 = vadd.f32 %v300, %v517
  %519 = vmatprep.mubr.f32.mxu0 %v53
  %520 = vmatmul.mubr.f32.gmra.mrb[0].mxu0 %v52
  %v521 = vpop.f32.mrb[0].mxu0
  %v522 = vadd.f32 %v305, %v521
  %v523 = vpop.f32.mrb[0].mxu0
  %v524 = vadd.f32 %v305, %v523
  %525 = vmatprep.mubr.f32.mxu0 %v56
  %526 = vmatmul.mubr.f32.gmra.mrb[0].mxu0 %v55
  %v527 = vpop.f32.mrb[0].mxu0
  %v528 = vadd.f32 %v310, %v527
  %v529 = vpop.f32.mrb[0].mxu0
  %v530 = vadd.f32 %v310, %v529
  %531 = vmatprep.mubr.f32.mxu0 %v59
  %532 = vmatmul.mubr.f32.gmra.mrb[0].mxu0 %v58
  %v533 = vpop.f32.mrb[0].mxu0
  %v534 = vadd.f32 %v315, %v533
  %v535 = vpop.f32.mrb[0].mxu0
  %v536 = vadd.f32 %v315, %v535
  %537 = vmatprep.mubr.f32.mxu0 %v62
  %538 = vmatmul.mubr.f32.gmra.mrb[0].mxu0 %v61
  %v539 = vpop.f32.mrb[0].mxu0
  %v540 = vadd.f32 %v320, %v539
  %v541 = vpop.f32.mrb[0].mxu0
  %v542 = vadd.f32 %v320, %v541
  %543 = vmatprep.mubr.f32.mxu0 %v65
  %544 = vmatmul.mubr.f32.gmra.mrb[0].mxu0 %v64
  %v545 = vpop.f32.mrb[0].mxu0
  %v546 = vadd.f32 %v325, %v545
  %v547 = vpop.f32.mrb[0].mxu0
  %v548 = vadd.f32 %v325, %v547
  %549 = vdwg.mxu0
  %550 = vmatprep.subr.mxu0 %v196
  %551 = vmatpush1.msra.mxu0 %v195
  %552 = vmatprep.subr.mxu0 %v200
  %553 = vmatpush1.msra.mxu0 %v199
  %554 = vmatprep.subr.mxu0 %v204
  %555 = vmatpush1.msra.mxu0 %v203
  %556 = vmatprep.subr.mxu0 %v208
  %557 = vmatpush1.msra.mxu0 %v207
  %558 = vmatprep.subr.mxu0 %v212
  %559 = vmatpush1.msra.mxu0 %v211
  %560 = vmatprep.subr.mxu0 %v216
  %561 = vmatpush1.msra.mxu0 %v215
  %562 = vmatprep.subr.mxu0 %v220
  %563 = vmatpush1.msra.mxu0 %v219
  %564 = vmatprep.subr.mxu0 %v224
  %565 = vmatpush1.msra.mxu0 %v223
  %566 = vmatprep.subr.mxu0 %v381
  %567 = vmatpush1.msra.mxu0 %v378
  %568 = vmatprep.subr.mxu0 0.0
  %569 = vmatpush1.msra.mxu0 0.0
  %570 = vmatprep.subr.mxu0 0.0
  %571 = vmatpush1.msra.mxu0 0.0
  %572 = vmatprep.subr.mxu0 0.0
  %573 = vmatpush1.msra.mxu0 0.0
  %574 = vmatprep.subr.mxu0 0.0
  %575 = vmatpush1.msra.mxu0 0.0
  %576 = vmatprep.subr.mxu0 0.0
  %577 = vmatpush1.msra.mxu0 0.0
  %578 = vmatprep.subr.mxu0 0.0
  %579 = vmatpush1.msra.mxu0 0.0
  %580 = vmatprep.subr.mxu0 0.0
  %581 = vmatpush1.msra.mxu0 0.0
  %582 = vmatprep.subr.mxu0 0.0
  %583 = vmatpush1.msra.mxu0 0.0
  %584 = vmatprep.subr.mxu0 0.0
  %585 = vmatpush1.msra.mxu0 0.0
  %586 = vmatprep.subr.mxu0 0.0
  %587 = vmatpush1.msra.mxu0 0.0
  %588 = vmatprep.subr.mxu0 0.0
  %589 = vmatpush1.msra.mxu0 0.0
  %590 = vmatprep.subr.mxu0 0.0
  %591 = vmatpush1.msra.mxu0 0.0
  %592 = vmatprep.subr.mxu0 0.0
  %593 = vmatpush1.msra.mxu0 0.0
  %594 = vmatprep.subr.mxu0 0.0
  %595 = vmatpush1.msra.mxu0 0.0
  %596 = vmatprep.subr.mxu0 0.0
  %597 = vmatpush1.msra.mxu0 0.0
  %598 = vmatprep.subr.mxu0 0.0
  %599 = vmatpush1.msra.mxu0 0.0
  %600 = vmatprep.subr.mxu0 0.0
  %601 = vmatpush1.msra.mxu0 0.0
  %602 = vmatprep.subr.mxu0 0.0
  %603 = vmatpush1.msra.mxu0 0.0
  %604 = vmatprep.subr.mxu0 0.0
  %605 = vmatpush1.msra.mxu0 0.0
  %606 = vmatprep.subr.mxu0 0.0
  %607 = vmatpush1.msra.mxu0 0.0
  %608 = vmatprep.subr.mxu0 0.0
  %609 = vmatpush1.msra.mxu0 0.0
  %610 = vmatprep.subr.mxu0 0.0
  %611 = vmatpush1.msra.mxu0 0.0
  %612 = vmatprep.subr.mxu0 0.0
  %613 = vmatpush1.msra.mxu0 0.0
  %614 = vmatprep.mubr.f32.mxu0 0.0
  %615 = vmatmul.mubr.f32.gmra.mrb[0].mxu0 %v329
  %v616 = vpop.f32.mrb[0].mxu0
  %v617 = vadd.f32 %v456, %v616
  %v618 = vpop.f32.mrb[0].mxu0
  %v619 = vadd.f32 %v458, %v618
  %620 = vmatprep.mubr.f32.mxu0 0.0
  %621 = vmatmul.mubr.f32.gmra.mrb[0].mxu0 %v332
  %v622 = vpop.f32.mrb[0].mxu0
  %v623 = vadd.f32 %v462, %v622
  %v624 = vpop.f32.mrb[0].mxu0
  %v625 = vadd.f32 %v464, %v624
  %626 = vmatprep.mubr.f32.mxu0 0.0
  %627 = vmatmul.mubr.f32.gmra.mrb[0].mxu0 %v335
  %v628 = vpop.f32.mrb[0].mxu0
  %v629 = vadd.f32 %v468, %v628
  %v630 = vpop.f32.mrb[0].mxu0
  %v631 = vadd.f32 %v470, %v630
  %632 = vmatprep.mubr.f32.mxu0 0.0
  %633 = vmatmul.mubr.f32.gmra.mrb[0].mxu0 %v338
  %v634 = vpop.f32.mrb[0].mxu0
  %v635 = vadd.f32 %v474, %v634
  %v636 = vpop.f32.mrb[0].mxu0
  %v637 = vadd.f32 %v476, %v636
  %638 = vmatprep.mubr.f32.mxu0 0.0
  %639 = vmatmul.mubr.f32.gmra.mrb[0].mxu0 %v341
  %v640 = vpop.f32.mrb[0].mxu0
  %v641 = vadd.f32 %v480, %v640
  %v642 = vpop.f32.mrb[0].mxu0
  %v643 = vadd.f32 %v482, %v642
  %644 = vmatprep.mubr.f32.mxu0 0.0
  %645 = vmatmul.mubr.f32.gmra.mrb[0].mxu0 %v344
  %v646 = vpop.f32.mrb[0].mxu0
  %v647 = vadd.f32 %v486, %v646
  %v648 = vpop.f32.mrb[0].mxu0
  %v649 = vadd.f32 %v488, %v648
  %650 = vmatprep.mubr.f32.mxu0 0.0
  %651 = vmatmul.mubr.f32.gmra.mrb[0].mxu0 %v347
  %v652 = vpop.f32.mrb[0].mxu0
  %v653 = vadd.f32 %v492, %v652
  %v654 = vpop.f32.mrb[0].mxu0
  %v655 = vadd.f32 %v494, %v654
  %656 = vmatprep.mubr.f32.mxu0 0.0
  %657 = vmatmul.mubr.f32.gmra.mrb[0].mxu0 %v350
  %v658 = vpop.f32.mrb[0].mxu0
  %v659 = vadd.f32 %v498, %v658
  %v660 = vpop.f32.mrb[0].mxu0
  %v661 = vadd.f32 %v500, %v660
  %662 = vmatprep.mubr.f32.mxu0 0.0
  %663 = vmatmul.mubr.f32.gmra.mrb[0].mxu0 %v353
  %v664 = vpop.f32.mrb[0].mxu0
  %v665 = vadd.f32 %v504, %v664
  %v666 = vpop.f32.mrb[0].mxu0
  %v667 = vadd.f32 %v506, %v666
  %668 = vmatprep.mubr.f32.mxu0 0.0
  %669 = vmatmul.mubr.f32.gmra.mrb[0].mxu0 %v356
  %v670 = vpop.f32.mrb[0].mxu0
  %v671 = vadd.f32 %v510, %v670
  %v672 = vpop.f32.mrb[0].mxu0
  %v673 = vadd.f32 %v512, %v672
  %674 = vmatprep.mubr.f32.mxu0 0.0
  %675 = vmatmul.mubr.f32.gmra.mrb[0].mxu0 %v359
  %v676 = vpop.f32.mrb[0].mxu0
  %v677 = vadd.f32 %v516, %v676
  %v678 = vpop.f32.mrb[0].mxu0
  %v679 = vadd.f32 %v518, %v678
  %680 = vmatprep.mubr.f32.mxu0 0.0
  %681 = vmatmul.mubr.f32.gmra.mrb[0].mxu0 %v362
  %v682 = vpop.f32.mrb[0].mxu0
  %v683 = vadd.f32 %v522, %v682
  %v684 = vpop.f32.mrb[0].mxu0
  %v685 = vadd.f32 %v524, %v684
  %686 = vmatprep.mubr.f32.mxu0 0.0
  %687 = vmatmul.mubr.f32.gmra.mrb[0].mxu0 %v365
  %v688 = vpop.f32.mrb[0].mxu0
  %v689 = vadd.f32 %v528, %v688
  %v690 = vpop.f32.mrb[0].mxu0
  %v691 = vadd.f32 %v530, %v690
  %692 = vmatprep.mubr.f32.mxu0 0.0
  %693 = vmatmul.mubr.f32.gmra.mrb[0].mxu0 %v368
  %v694 = vpop.f32.mrb[0].mxu0
  %v695 = vadd.f32 %v534, %v694
  %v696 = vpop.f32.mrb[0].mxu0
  %v697 = vadd.f32 %v536, %v696
  %698 = vmatprep.mubr.f32.mxu0 0.0
  %699 = vmatmul.mubr.f32.gmra.mrb[0].mxu0 %v371
  %v700 = vpop.f32.mrb[0].mxu0
  %v701 = vadd.f32 %v540, %v700
  %v702 = vpop.f32.mrb[0].mxu0
  %v703 = vadd.f32 %v542, %v702
  %704 = vmatprep.mubr.f32.mxu0 0.0
  %705 = vmatmul.mubr.f32.gmra.mrb[0].mxu0 %v374
  %v706 = vpop.f32.mrb[0].mxu0
  %v707 = vadd.f32 %v546, %v706
  %v708 = vpop.f32.mrb[0].mxu0
  %v709 = vadd.f32 %v548, %v708
  %710 = vdwg.mxu0
  %711 = vmatprep.subr.mxu0 %v70
  %712 = vmatpush1.msra.mxu0 %v69
  %713 = vmatprep.subr.mxu0 %v74
  %714 = vmatpush1.msra.mxu0 %v73
  %715 = vmatprep.subr.mxu0 %v78
  %716 = vmatpush1.msra.mxu0 %v77
  %717 = vmatprep.subr.mxu0 %v82
  %718 = vmatpush1.msra.mxu0 %v81
  %719 = vmatprep.subr.mxu0 %v86
  %720 = vmatpush1.msra.mxu0 %v85
  %721 = vmatprep.subr.mxu0 %v90
  %722 = vmatpush1.msra.mxu0 %v89
  %723 = vmatprep.subr.mxu0 %v94
  %724 = vmatpush1.msra.mxu0 %v93
  %725 = vmatprep.subr.mxu0 %v98
  %726 = vmatpush1.msra.mxu0 %v97
  %727 = vmatprep.subr.mxu0 %v102
  %728 = vmatpush1.msra.mxu0 %v101
  %729 = vmatprep.subr.mxu0 %v106
  %730 = vmatpush1.msra.mxu0 %v105
  %731 = vmatprep.subr.mxu0 %v110
  %732 = vmatpush1.msra.mxu0 %v109
  %733 = vmatprep.subr.mxu0 %v114
  %734 = vmatpush1.msra.mxu0 %v113
  %735 = vmatprep.subr.mxu0 %v118
  %736 = vmatpush1.msra.mxu0 %v117
  %737 = vmatprep.subr.mxu0 %v122
  %738 = vmatpush1.msra.mxu0 %v121
  %739 = vmatprep.subr.mxu0 %v126
  %740 = vmatpush1.msra.mxu0 %v125
  %741 = vmatprep.subr.mxu0 %v130
  %742 = vmatpush1.msra.mxu0 %v129
  %743 = vmatprep.subr.mxu0 %v134
  %744 = vmatpush1.msra.mxu0 %v133
  %745 = vmatprep.subr.mxu0 %v138
  %746 = vmatpush1.msra.mxu0 %v137
  %747 = vmatprep.subr.mxu0 %v142
  %748 = vmatpush1.msra.mxu0 %v141
  %749 = vmatprep.subr.mxu0 %v146
  %750 = vmatpush1.msra.mxu0 %v145
  %751 = vmatprep.subr.mxu0 %v150
  %752 = vmatpush1.msra.mxu0 %v149
  %753 = vmatprep.subr.mxu0 %v154
  %754 = vmatpush1.msra.mxu0 %v153
  %755 = vmatprep.subr.mxu0 %v158
  %756 = vmatpush1.msra.mxu0 %v157
  %757 = vmatprep.subr.mxu0 %v162
  %758 = vmatpush1.msra.mxu0 %v161
  %759 = vmatprep.subr.mxu0 %v166
  %760 = vmatpush1.msra.mxu0 %v165
  %761 = vmatprep.subr.mxu0 %v170
  %762 = vmatpush1.msra.mxu0 %v169
  %763 = vmatprep.subr.mxu0 %v174
  %764 = vmatpush1.msra.mxu0 %v173
  %765 = vmatprep.subr.mxu0 %v178
  %766 = vmatpush1.msra.mxu0 %v177
  %767 = vmatprep.subr.mxu0 %v182
  %768 = vmatpush1.msra.mxu0 %v181
  %769 = vmatprep.subr.mxu0 %v186
  %770 = vmatpush1.msra.mxu0 %v185
  %771 = vmatprep.subr.mxu0 %v190
  %772 = vmatpush1.msra.mxu0 %v189
  %773 = vmatprep.subr.mxu0 %v194
  %774 = vmatpush1.msra.mxu0 %v193
  %775 = vmatprep.mubr.f32.mxu0 %v20
  %776 = vmatmul.mubr.f32.gmra.mrb[0].mxu0 %v19
  %v777 = vpop.f32.mrb[0].mxu0
  %v778 = vadd.f32 %v250, %v777
  %v779 = vpop.f32.mrb[0].mxu0
  %v780 = vadd.f32 %v250, %v779
  %781 = vmatprep.mubr.f32.mxu0 %v23
  %782 = vmatmul.mubr.f32.gmra.mrb[0].mxu0 %v22
  %v783 = vpop.f32.mrb[0].mxu0
  %v784 = vadd.f32 %v255, %v783
  %v785 = vpop.f32.mrb[0].mxu0
  %v786 = vadd.f32 %v255, %v785
  %787 = vmatprep.mubr.f32.mxu0 %v26
  %788 = vmatmul.mubr.f32.gmra.mrb[0].mxu0 %v25
  %v789 = vpop.f32.mrb[0].mxu0
  %v790 = vadd.f32 %v260, %v789
  %v791 = vpop.f32.mrb[0].mxu0
  %v792 = vadd.f32 %v260, %v791
  %793 = vmatprep.mubr.f32.mxu0 %v29
  %794 = vmatmul.mubr.f32.gmra.mrb[0].mxu0 %v28
  %v795 = vpop.f32.mrb[0].mxu0
  %v796 = vadd.f32 %v265, %v795
  %v797 = vpop.f32.mrb[0].mxu0
  %v798 = vadd.f32 %v265, %v797
  %799 = vmatprep.mubr.f32.mxu0 %v32
  %800 = vmatmul.mubr.f32.gmra.mrb[0].mxu0 %v31
  %v801 = vpop.f32.mrb[0].mxu0
  %v802 = vadd.f32 %v270, %v801
  %v803 = vpop.f32.mrb[0].mxu0
  %v804 = vadd.f32 %v270, %v803
  %805 = vmatprep.mubr.f32.mxu0 %v35
  %806 = vmatmul.mubr.f32.gmra.mrb[0].mxu0 %v34
  %v807 = vpop.f32.mrb[0].mxu0
  %v808 = vadd.f32 %v275, %v807
  %v809 = vpop.f32.mrb[0].mxu0
  %v810 = vadd.f32 %v275, %v809
  %811 = vmatprep.mubr.f32.mxu0 %v38
  %812 = vmatmul.mubr.f32.gmra.mrb[0].mxu0 %v37
  %v813 = vpop.f32.mrb[0].mxu0
  %v814 = vadd.f32 %v280, %v813
  %v815 = vpop.f32.mrb[0].mxu0
  %v816 = vadd.f32 %v280, %v815
  %817 = vmatprep.mubr.f32.mxu0 %v41
  %818 = vmatmul.mubr.f32.gmra.mrb[0].mxu0 %v40
  %v819 = vpop.f32.mrb[0].mxu0
  %v820 = vadd.f32 %v285, %v819
  %v821 = vpop.f32.mrb[0].mxu0
  %v822 = vadd.f32 %v285, %v821
  %823 = vmatprep.mubr.f32.mxu0 %v44
  %824 = vmatmul.mubr.f32.gmra.mrb[0].mxu0 %v43
  %v825 = vpop.f32.mrb[0].mxu0
  %v826 = vadd.f32 %v290, %v825
  %v827 = vpop.f32.mrb[0].mxu0
  %v828 = vadd.f32 %v290, %v827
  %829 = vmatprep.mubr.f32.mxu0 %v47
  %830 = vmatmul.mubr.f32.gmra.mrb[0].mxu0 %v46
  %v831 = vpop.f32.mrb[0].mxu0
  %v832 = vadd.f32 %v295, %v831
  %v833 = vpop.f32.mrb[0].mxu0
  %v834 = vadd.f32 %v295, %v833
  %835 = vmatprep.mubr.f32.mxu0 %v50
  %836 = vmatmul.mubr.f32.gmra.mrb[0].mxu0 %v49
  %v837 = vpop.f32.mrb[0].mxu0
  %v838 = vadd.f32 %v300, %v837
  %v839 = vpop.f32.mrb[0].mxu0
  %v840 = vadd.f32 %v300, %v839
  %841 = vmatprep.mubr.f32.mxu0 %v53
  %842 = vmatmul.mubr.f32.gmra.mrb[0].mxu0 %v52
  %v843 = vpop.f32.mrb[0].mxu0
  %v844 = vadd.f32 %v305, %v843
  %v845 = vpop.f32.mrb[0].mxu0
  %v846 = vadd.f32 %v305, %v845
  %847 = vmatprep.mubr.f32.mxu0 %v56
  %848 = vmatmul.mubr.f32.gmra.mrb[0].mxu0 %v55
  %v849 = vpop.f32.mrb[0].mxu0
  %v850 = vadd.f32 %v310, %v849
  %v851 = vpop.f32.mrb[0].mxu0
  %v852 = vadd.f32 %v310, %v851
  %853 = vmatprep.mubr.f32.mxu0 %v59
  %854 = vmatmul.mubr.f32.gmra.mrb[0].mxu0 %v58
  %v855 = vpop.f32.mrb[0].mxu0
  %v856 = vadd.f32 %v315, %v855
  %v857 = vpop.f32.mrb[0].mxu0
  %v858 = vadd.f32 %v315, %v857
  %859 = vmatprep.mubr.f32.mxu0 %v62
  %860 = vmatmul.mubr.f32.gmra.mrb[0].mxu0 %v61
  %v861 = vpop.f32.mrb[0].mxu0
  %v862 = vadd.f32 %v320, %v861
  %v863 = vpop.f32.mrb[0].mxu0
  %v864 = vadd.f32 %v320, %v863
  %865 = vmatprep.mubr.f32.mxu0 %v65
  %866 = vmatmul.mubr.f32.gmra.mrb[0].mxu0 %v64
  %v867 = vpop.f32.mrb[0].mxu0
  %v868 = vadd.f32 %v325, %v867
  %v869 = vpop.f32.mrb[0].mxu0
  %v870 = vadd.f32 %v325, %v869
  %871 = vdwg.mxu0
  %872 = vmatprep.subr.mxu0 %v198
  %873 = vmatpush1.msra.mxu0 %v197
  %874 = vmatprep.subr.mxu0 %v202
  %875 = vmatpush1.msra.mxu0 %v201
  %876 = vmatprep.subr.mxu0 %v206
  %877 = vmatpush1.msra.mxu0 %v205
  %878 = vmatprep.subr.mxu0 %v210
  %879 = vmatpush1.msra.mxu0 %v209
  %880 = vmatprep.subr.mxu0 %v214
  %881 = vmatpush1.msra.mxu0 %v213
  %882 = vmatprep.subr.mxu0 %v218
  %883 = vmatpush1.msra.mxu0 %v217
  %884 = vmatprep.subr.mxu0 %v222
  %885 = vmatpush1.msra.mxu0 %v221
  %886 = vmatprep.subr.mxu0 %v226
  %887 = vmatpush1.msra.mxu0 %v225
  %888 = vmatprep.subr.mxu0 %v387
  %889 = vmatpush1.msra.mxu0 %v384
  %890 = vmatprep.subr.mxu0 0.0
  %891 = vmatpush1.msra.mxu0 0.0
  %892 = vmatprep.subr.mxu0 0.0
  %893 = vmatpush1.msra.mxu0 0.0
  %894 = vmatprep.subr.mxu0 0.0
  %895 = vmatpush1.msra.mxu0 0.0
  %896 = vmatprep.subr.mxu0 0.0
  %897 = vmatpush1.msra.mxu0 0.0
  %898 = vmatprep.subr.mxu0 0.0
  %899 = vmatpush1.msra.mxu0 0.0
  %900 = vmatprep.subr.mxu0 0.0
  %901 = vmatpush1.msra.mxu0 0.0
  %902 = vmatprep.subr.mxu0 0.0
  %903 = vmatpush1.msra.mxu0 0.0
  %904 = vmatprep.subr.mxu0 0.0
  %905 = vmatpush1.msra.mxu0 0.0
  %906 = vmatprep.subr.mxu0 0.0
  %907 = vmatpush1.msra.mxu0 0.0
  %908 = vmatprep.subr.mxu0 0.0
  %909 = vmatpush1.msra.mxu0 0.0
  %910 = vmatprep.subr.mxu0 0.0
  %911 = vmatpush1.msra.mxu0 0.0
  %912 = vmatprep.subr.mxu0 0.0
  %913 = vmatpush1.msra.mxu0 0.0
  %914 = vmatprep.subr.mxu0 0.0
  %915 = vmatpush1.msra.mxu0 0.0
  %916 = vmatprep.subr.mxu0 0.0
  %917 = vmatpush1.msra.mxu0 0.0
  %918 = vmatprep.subr.mxu0 0.0
  %919 = vmatpush1.msra.mxu0 0.0
  %920 = vmatprep.subr.mxu0 0.0
  %921 = vmatpush1.msra.mxu0 0.0
  %922 = vmatprep.subr.mxu0 0.0
  %923 = vmatpush1.msra.mxu0 0.0
  %924 = vmatprep.subr.mxu0 0.0
  %925 = vmatpush1.msra.mxu0 0.0
  %926 = vmatprep.subr.mxu0 0.0
  %927 = vmatpush1.msra.mxu0 0.0
  %928 = vmatprep.subr.mxu0 0.0
  %929 = vmatpush1.msra.mxu0 0.0
  %930 = vmatprep.subr.mxu0 0.0
  %931 = vmatpush1.msra.mxu0 0.0
  %932 = vmatprep.subr.mxu0 0.0
  %933 = vmatpush1.msra.mxu0 0.0
  %934 = vmatprep.subr.mxu0 0.0
  %935 = vmatpush1.msra.mxu0 0.0
  %936 = vmatprep.mubr.f32.mxu0 0.0
  %937 = vmatmul.mubr.f32.gmra.mrb[0].mxu0 %v329
  %v938 = vpop.f32.mrb[0].mxu0
  %v939 = vadd.f32 %v778, %v938
  %v940 = vpop.f32.mrb[0].mxu0
  %v941 = vadd.f32 %v780, %v940
  %942 = vmatprep.mubr.f32.mxu0 0.0
  %943 = vmatmul.mubr.f32.gmra.mrb[0].mxu0 %v332
  %v944 = vpop.f32.mrb[0].mxu0
  %v945 = vadd.f32 %v784, %v944
  %v946 = vpop.f32.mrb[0].mxu0
  %v947 = vadd.f32 %v786, %v946
  %948 = vmatprep.mubr.f32.mxu0 0.0
  %949 = vmatmul.mubr.f32.gmra.mrb[0].mxu0 %v335
  %v950 = vpop.f32.mrb[0].mxu0
  %v951 = vadd.f32 %v790, %v950
  %v952 = vpop.f32.mrb[0].mxu0
  %v953 = vadd.f32 %v792, %v952
  %954 = vmatprep.mubr.f32.mxu0 0.0
  %955 = vmatmul.mubr.f32.gmra.mrb[0].mxu0 %v338
  %v956 = vpop.f32.mrb[0].mxu0
  %v957 = vadd.f32 %v796, %v956
  %v958 = vpop.f32.mrb[0].mxu0
  %v959 = vadd.f32 %v798, %v958
  %960 = vmatprep.mubr.f32.mxu0 0.0
  %961 = vmatmul.mubr.f32.gmra.mrb[0].mxu0 %v341
  %v962 = vpop.f32.mrb[0].mxu0
  %v963 = vadd.f32 %v802, %v962
  %v964 = vpop.f32.mrb[0].mxu0
  %v965 = vadd.f32 %v804, %v964
  %966 = vmatprep.mubr.f32.mxu0 0.0
  %967 = vmatmul.mubr.f32.gmra.mrb[0].mxu0 %v344
  %v968 = vpop.f32.mrb[0].mxu0
  %v969 = vadd.f32 %v808, %v968
  %v970 = vpop.f32.mrb[0].mxu0
  %v971 = vadd.f32 %v810, %v970
  %972 = vmatprep.mubr.f32.mxu0 0.0
  %973 = vmatmul.mubr.f32.gmra.mrb[0].mxu0 %v347
  %v974 = vpop.f32.mrb[0].mxu0
  %v975 = vadd.f32 %v814, %v974
  %v976 = vpop.f32.mrb[0].mxu0
  %v977 = vadd.f32 %v816, %v976
  %978 = vmatprep.mubr.f32.mxu0 0.0
  %979 = vmatmul.mubr.f32.gmra.mrb[0].mxu0 %v350
  %v980 = vpop.f32.mrb[0].mxu0
  %v981 = vadd.f32 %v820, %v980
  %v982 = vpop.f32.mrb[0].mxu0
  %v983 = vadd.f32 %v822, %v982
  %984 = vmatprep.mubr.f32.mxu0 0.0
  %985 = vmatmul.mubr.f32.gmra.mrb[0].mxu0 %v353
  %v986 = vpop.f32.mrb[0].mxu0
  %v987 = vadd.f32 %v826, %v986
  %v988 = vpop.f32.mrb[0].mxu0
  %v989 = vadd.f32 %v828, %v988
  %990 = vmatprep.mubr.f32.mxu0 0.0
  %991 = vmatmul.mubr.f32.gmra.mrb[0].mxu0 %v356
  %v992 = vpop.f32.mrb[0].mxu0
  %v993 = vadd.f32 %v832, %v992
  %v994 = vpop.f32.mrb[0].mxu0
  %v995 = vadd.f32 %v834, %v994
  %996 = vmatprep.mubr.f32.mxu0 0.0
  %997 = vmatmul.mubr.f32.gmra.mrb[0].mxu0 %v359
  %v998 = vpop.f32.mrb[0].mxu0
  %v999 = vadd.f32 %v838, %v998
  %v1000 = vpop.f32.mrb[0].mxu0
  %v1001 = vadd.f32 %v840, %v1000
  %1002 = vmatprep.mubr.f32.mxu0 0.0
  %1003 = vmatmul.mubr.f32.gmra.mrb[0].mxu0 %v362
  %v1004 = vpop.f32.mrb[0].mxu0
  %v1005 = vadd.f32 %v844, %v1004
  %v1006 = vpop.f32.mrb[0].mxu0
  %v1007 = vadd.f32 %v846, %v1006
  %1008 = vmatprep.mubr.f32.mxu0 0.0
  %1009 = vmatmul.mubr.f32.gmra.mrb[0].mxu0 %v365
  %v1010 = vpop.f32.mrb[0].mxu0
  %v1011 = vadd.f32 %v850, %v1010
  %v1012 = vpop.f32.mrb[0].mxu0
  %v1013 = vadd.f32 %v852, %v1012
  %1014 = vmatprep.mubr.f32.mxu0 0.0
  %1015 = vmatmul.mubr.f32.gmra.mrb[0].mxu0 %v368
  %v1016 = vpop.f32.mrb[0].mxu0
  %v1017 = vadd.f32 %v856, %v1016
  %v1018 = vpop.f32.mrb[0].mxu0
  %v1019 = vadd.f32 %v858, %v1018
  %1020 = vmatprep.mubr.f32.mxu0 0.0
  %1021 = vmatmul.mubr.f32.gmra.mrb[0].mxu0 %v371
  %v1022 = vpop.f32.mrb[0].mxu0
  %v1023 = vadd.f32 %v862, %v1022
  %v1024 = vpop.f32.mrb[0].mxu0
  %v1025 = vadd.f32 %v864, %v1024
  %1026 = vmatprep.mubr.f32.mxu0 0.0
  %1027 = vmatmul.mubr.f32.gmra.mrb[0].mxu0 %v374
  %v1028 = vpop.f32.mrb[0].mxu0
  %v1029 = vadd.f32 %v868, %v1028
  %v1030 = vpop.f32.mrb[0].mxu0
  %v1031 = vadd.f32 %v870, %v1030
  %1032 = vdwg.mxu0
  %v1033 = vxor.u32 %v617, 2147483648
  %v1034 = vxor.u32 %v619, 2147483648
  %v1035 = vxor.u32 %v939, 2147483648
  %v1036 = vxor.u32 %v941, 2147483648
  %v1037 = vxor.u32 %v623, 2147483648
  %v1038 = vxor.u32 %v625, 2147483648
  %v1039 = vxor.u32 %v945, 2147483648
  %v1040 = vxor.u32 %v947, 2147483648
  %v1041 = vxor.u32 %v629, 2147483648
  %v1042 = vxor.u32 %v631, 2147483648
  %v1043 = vxor.u32 %v951, 2147483648
  %v1044 = vxor.u32 %v953, 2147483648
  %v1045 = vxor.u32 %v635, 2147483648
  %v1046 = vxor.u32 %v637, 2147483648
  %v1047 = vxor.u32 %v957, 2147483648
  %v1048 = vxor.u32 %v959, 2147483648
  %v1049 = vmul.f32 %v1033, 1.442695
  %v1050 = vpow.pop %v1049
  %v1051 = vmul.f32 %v1034, 1.442695
  %v1052 = vpow.pop %v1051
  %v1053 = vmul.f32 %v1035, 1.442695
  %v1054 = vpow.pop %v1053
  %v1055 = vmul.f32 %v1036, 1.442695
  %v1056 = vpow.pop %v1055
  %v1057 = vmul.f32 %v1037, 1.442695
  %v1058 = vpow.pop %v1057
  %v1059 = vmul.f32 %v1038, 1.442695
  %v1060 = vpow.pop %v1059
  %v1061 = vmul.f32 %v1039, 1.442695
  %v1062 = vpow.pop %v1061
  %v1063 = vmul.f32 %v1040, 1.442695
  %v1064 = vpow.pop %v1063
  %v1065 = vmul.f32 %v1041, 1.442695
  %v1066 = vpow.pop %v1065
  %v1067 = vmul.f32 %v1042, 1.442695
  %v1068 = vpow.pop %v1067
  %v1069 = vmul.f32 %v1043, 1.442695
  %v1070 = vpow.pop %v1069
  %v1071 = vmul.f32 %v1044, 1.442695
  %v1072 = vpow.pop %v1071
  %v1073 = vmul.f32 %v1045, 1.442695
  %v1074 = vpow.pop %v1073
  %v1075 = vmul.f32 %v1046, 1.442695
  %v1076 = vpow.pop %v1075
  %v1077 = vmul.f32 %v1047, 1.442695
  %v1078 = vpow.pop %v1077
  %v1079 = vmul.f32 %v1048, 1.442695
  %v1080 = vpow.pop %v1079
  %v1081 = vadd.f32 %v1050, 1.0
  %v1082 = vadd.f32 %v1052, 1.0
  %v1083 = vadd.f32 %v1054, 1.0
  %v1084 = vadd.f32 %v1056, 1.0
  %v1085 = vadd.f32 %v1058, 1.0
  %v1086 = vadd.f32 %v1060, 1.0
  %v1087 = vadd.f32 %v1062, 1.0
  %v1088 = vadd.f32 %v1064, 1.0
  %v1089 = vadd.f32 %v1066, 1.0
  %v1090 = vadd.f32 %v1068, 1.0
  %v1091 = vadd.f32 %v1070, 1.0
  %v1092 = vadd.f32 %v1072, 1.0
  %v1093 = vadd.f32 %v1074, 1.0
  %v1094 = vadd.f32 %v1076, 1.0
  %v1095 = vadd.f32 %v1078, 1.0
  %v1096 = vadd.f32 %v1080, 1.0
  %v1097 = vrcp.pop %v1081
  %v1098 = vmul.f32 1.0, %v1097
  %v1099 = vrcp.pop %v1082
  %v1100 = vmul.f32 1.0, %v1099
  %v1101 = vrcp.pop %v1083
  %v1102 = vmul.f32 1.0, %v1101
  %v1103 = vrcp.pop %v1084
  %v1104 = vmul.f32 1.0, %v1103
  %v1105 = vrcp.pop %v1085
  %v1106 = vmul.f32 1.0, %v1105
  %v1107 = vrcp.pop %v1086
  %v1108 = vmul.f32 1.0, %v1107
  %v1109 = vrcp.pop %v1087
  %v1110 = vmul.f32 1.0, %v1109
  %v1111 = vrcp.pop %v1088
  %v1112 = vmul.f32 1.0, %v1111
  %v1113 = vrcp.pop %v1089
  %v1114 = vmul.f32 1.0, %v1113
  %v1115 = vrcp.pop %v1090
  %v1116 = vmul.f32 1.0, %v1115
  %v1117 = vrcp.pop %v1091
  %v1118 = vmul.f32 1.0, %v1117
  %v1119 = vrcp.pop %v1092
  %v1120 = vmul.f32 1.0, %v1119
  %v1121 = vrcp.pop %v1093
  %v1122 = vmul.f32 1.0, %v1121
  %v1123 = vrcp.pop %v1094
  %v1124 = vmul.f32 1.0, %v1123
  %v1125 = vrcp.pop %v1095
  %v1126 = vmul.f32 1.0, %v1125
  %v1127 = vrcp.pop %v1096
  %v1128 = vmul.f32 1.0, %v1127
  %v1129 = vxor.u32 %v641, 2147483648
  %v1130 = vxor.u32 %v643, 2147483648
  %v1131 = vxor.u32 %v963, 2147483648
  %v1132 = vxor.u32 %v965, 2147483648
  %v1133 = vxor.u32 %v647, 2147483648
  %v1134 = vxor.u32 %v649, 2147483648
  %v1135 = vxor.u32 %v969, 2147483648
  %v1136 = vxor.u32 %v971, 2147483648
  %v1137 = vxor.u32 %v653, 2147483648
  %v1138 = vxor.u32 %v655, 2147483648
  %v1139 = vxor.u32 %v975, 2147483648
  %v1140 = vxor.u32 %v977, 2147483648
  %v1141 = vxor.u32 %v659, 2147483648
  %v1142 = vxor.u32 %v661, 2147483648
  %v1143 = vxor.u32 %v981, 2147483648
  %v1144 = vxor.u32 %v983, 2147483648
  %v1145 = vmul.f32 %v1129, 1.442695
  %v1146 = vpow.pop %v1145
  %v1147 = vmul.f32 %v1130, 1.442695
  %v1148 = vpow.pop %v1147
  %v1149 = vmul.f32 %v1131, 1.442695
  %v1150 = vpow.pop %v1149
  %v1151 = vmul.f32 %v1132, 1.442695
  %v1152 = vpow.pop %v1151
  %v1153 = vmul.f32 %v1133, 1.442695
  %v1154 = vpow.pop %v1153
  %v1155 = vmul.f32 %v1134, 1.442695
  %v1156 = vpow.pop %v1155
  %v1157 = vmul.f32 %v1135, 1.442695
  %v1158 = vpow.pop %v1157
  %v1159 = vmul.f32 %v1136, 1.442695
  %v1160 = vpow.pop %v1159
  %v1161 = vmul.f32 %v1137, 1.442695
  %v1162 = vpow.pop %v1161
  %v1163 = vmul.f32 %v1138, 1.442695
  %v1164 = vpow.pop %v1163
  %v1165 = vmul.f32 %v1139, 1.442695
  %v1166 = vpow.pop %v1165
  %v1167 = vmul.f32 %v1140, 1.442695
  %v1168 = vpow.pop %v1167
  %v1169 = vmul.f32 %v1141, 1.442695
  %v1170 = vpow.pop %v1169
  %v1171 = vmul.f32 %v1142, 1.442695
  %v1172 = vpow.pop %v1171
  %v1173 = vmul.f32 %v1143, 1.442695
  %v1174 = vpow.pop %v1173
  %v1175 = vmul.f32 %v1144, 1.442695
  %v1176 = vpow.pop %v1175
  %v1177 = vadd.f32 %v1146, 1.0
  %v1178 = vadd.f32 %v1148, 1.0
  %v1179 = vadd.f32 %v1150, 1.0
  %v1180 = vadd.f32 %v1152, 1.0
  %v1181 = vadd.f32 %v1154, 1.0
  %v1182 = vadd.f32 %v1156, 1.0
  %v1183 = vadd.f32 %v1158, 1.0
  %v1184 = vadd.f32 %v1160, 1.0
  %v1185 = vadd.f32 %v1162, 1.0
  %v1186 = vadd.f32 %v1164, 1.0
  %v1187 = vadd.f32 %v1166, 1.0
  %v1188 = vadd.f32 %v1168, 1.0
  %v1189 = vadd.f32 %v1170, 1.0
  %v1190 = vadd.f32 %v1172, 1.0
  %v1191 = vadd.f32 %v1174, 1.0
  %v1192 = vadd.f32 %v1176, 1.0
  %v1193 = vrcp.pop %v1177
  %v1194 = vmul.f32 1.0, %v1193
  %v1195 = vrcp.pop %v1178
  %v1196 = vmul.f32 1.0, %v1195
  %v1197 = vrcp.pop %v1179
  %v1198 = vmul.f32 1.0, %v1197
  %v1199 = vrcp.pop %v1180
  %v1200 = vmul.f32 1.0, %v1199
  %v1201 = vrcp.pop %v1181
  %v1202 = vmul.f32 1.0, %v1201
  %v1203 = vrcp.pop %v1182
  %v1204 = vmul.f32 1.0, %v1203
  %v1205 = vrcp.pop %v1183
  %v1206 = vmul.f32 1.0, %v1205
  %v1207 = vrcp.pop %v1184
  %v1208 = vmul.f32 1.0, %v1207
  %v1209 = vrcp.pop %v1185
  %v1210 = vmul.f32 1.0, %v1209
  %v1211 = vrcp.pop %v1186
  %v1212 = vmul.f32 1.0, %v1211
  %v1213 = vrcp.pop %v1187
  %v1214 = vmul.f32 1.0, %v1213
  %v1215 = vrcp.pop %v1188
  %v1216 = vmul.f32 1.0, %v1215
  %v1217 = vrcp.pop %v1189
  %v1218 = vmul.f32 1.0, %v1217
  %v1219 = vrcp.pop %v1190
  %v1220 = vmul.f32 1.0, %v1219
  %v1221 = vrcp.pop %v1191
  %v1222 = vmul.f32 1.0, %v1221
  %v1223 = vrcp.pop %v1192
  %v1224 = vmul.f32 1.0, %v1223
  %v1225 = vxor.u32 %v665, 2147483648
  %v1226 = vxor.u32 %v667, 2147483648
  %v1227 = vxor.u32 %v987, 2147483648
  %v1228 = vxor.u32 %v989, 2147483648
  %v1229 = vxor.u32 %v671, 2147483648
  %v1230 = vxor.u32 %v673, 2147483648
  %v1231 = vxor.u32 %v993, 2147483648
  %v1232 = vxor.u32 %v995, 2147483648
  %v1233 = vxor.u32 %v677, 2147483648
  %v1234 = vxor.u32 %v679, 2147483648
  %v1235 = vxor.u32 %v999, 2147483648
  %v1236 = vxor.u32 %v1001, 2147483648
  %v1237 = vxor.u32 %v683, 2147483648
  %v1238 = vxor.u32 %v685, 2147483648
  %v1239 = vxor.u32 %v1005, 2147483648
  %v1240 = vxor.u32 %v1007, 2147483648
  %v1241 = vmul.f32 %v1225, 1.442695
  %v1242 = vpow.pop %v1241
  %v1243 = vmul.f32 %v1226, 1.442695
  %v1244 = vpow.pop %v1243
  %v1245 = vmul.f32 %v1227, 1.442695
  %v1246 = vpow.pop %v1245
  %v1247 = vmul.f32 %v1228, 1.442695
  %v1248 = vpow.pop %v1247
  %v1249 = vmul.f32 %v1229, 1.442695
  %v1250 = vpow.pop %v1249
  %v1251 = vmul.f32 %v1230, 1.442695
  %v1252 = vpow.pop %v1251
  %v1253 = vmul.f32 %v1231, 1.442695
  %v1254 = vpow.pop %v1253
  %v1255 = vmul.f32 %v1232, 1.442695
  %v1256 = vpow.pop %v1255
  %v1257 = vmul.f32 %v1233, 1.442695
  %v1258 = vpow.pop %v1257
  %v1259 = vmul.f32 %v1234, 1.442695
  %v1260 = vpow.pop %v1259
  %v1261 = vmul.f32 %v1235, 1.442695
  %v1262 = vpow.pop %v1261
  %v1263 = vmul.f32 %v1236, 1.442695
  %v1264 = vpow.pop %v1263
  %v1265 = vmul.f32 %v1237, 1.442695
  %v1266 = vpow.pop %v1265
  %v1267 = vmul.f32 %v1238, 1.442695
  %v1268 = vpow.pop %v1267
  %v1269 = vmul.f32 %v1239, 1.442695
  %v1270 = vpow.pop %v1269
  %v1271 = vmul.f32 %v1240, 1.442695
  %v1272 = vpow.pop %v1271
  %v1273 = vadd.f32 %v1242, 1.0
  %v1274 = vadd.f32 %v1244, 1.0
  %v1275 = vadd.f32 %v1246, 1.0
  %v1276 = vadd.f32 %v1248, 1.0
  %v1277 = vadd.f32 %v1250, 1.0
  %v1278 = vadd.f32 %v1252, 1.0
  %v1279 = vadd.f32 %v1254, 1.0
  %v1280 = vadd.f32 %v1256, 1.0
  %v1281 = vadd.f32 %v1258, 1.0
  %v1282 = vadd.f32 %v1260, 1.0
  %v1283 = vadd.f32 %v1262, 1.0
  %v1284 = vadd.f32 %v1264, 1.0
  %v1285 = vadd.f32 %v1266, 1.0
  %v1286 = vadd.f32 %v1268, 1.0
  %v1287 = vadd.f32 %v1270, 1.0
  %v1288 = vadd.f32 %v1272, 1.0
  %v1289 = vrcp.pop %v1273
  %v1290 = vmul.f32 1.0, %v1289
  %v1291 = vrcp.pop %v1274
  %v1292 = vmul.f32 1.0, %v1291
  %v1293 = vrcp.pop %v1275
  %v1294 = vmul.f32 1.0, %v1293
  %v1295 = vrcp.pop %v1276
  %v1296 = vmul.f32 1.0, %v1295
  %v1297 = vrcp.pop %v1277
  %v1298 = vmul.f32 1.0, %v1297
  %v1299 = vrcp.pop %v1278
  %v1300 = vmul.f32 1.0, %v1299
  %v1301 = vrcp.pop %v1279
  %v1302 = vmul.f32 1.0, %v1301
  %v1303 = vrcp.pop %v1280
  %v1304 = vmul.f32 1.0, %v1303
  %v1305 = vrcp.pop %v1281
  %v1306 = vmul.f32 1.0, %v1305
  %v1307 = vrcp.pop %v1282
  %v1308 = vmul.f32 1.0, %v1307
  %v1309 = vrcp.pop %v1283
  %v1310 = vmul.f32 1.0, %v1309
  %v1311 = vrcp.pop %v1284
  %v1312 = vmul.f32 1.0, %v1311
  %v1313 = vrcp.pop %v1285
  %v1314 = vmul.f32 1.0, %v1313
  %v1315 = vrcp.pop %v1286
  %v1316 = vmul.f32 1.0, %v1315
  %v1317 = vrcp.pop %v1287
  %v1318 = vmul.f32 1.0, %v1317
  %v1319 = vrcp.pop %v1288
  %v1320 = vmul.f32 1.0, %v1319
  %v1321 = vtanh.pop %v689
  %v1322 = vtanh.pop %v691
  %v1323 = vtanh.pop %v1011
  %v1324 = vtanh.pop %v1013
  %v1325 = vtanh.pop %v695
  %v1326 = vtanh.pop %v697
  %v1327 = vtanh.pop %v1017
  %v1328 = vtanh.pop %v1019
  %v1329 = vtanh.pop %v701
  %v1330 = vtanh.pop %v703
  %v1331 = vtanh.pop %v1023
  %v1332 = vtanh.pop %v1025
  %v1333 = vtanh.pop %v707
  %v1334 = vtanh.pop %v709
  %v1335 = vtanh.pop %v1029
  %v1336 = vtanh.pop %v1031
  %v1337 = vld [vmem:[%s3] sm:$0xff]
  %v1338 = vld [vmem:[%s3 + $0x8] sm:$0xff]
  %v1339 = vld [vmem:[%s3 + $0x10] sm:$0xff]
  %v1340 = vld [vmem:[%s3 + $0x18] sm:$0xff]
  %v1341 = vld [vmem:[%s3 + $0x20] sm:$0xff]
  %v1342 = vld [vmem:[%s3 + $0x28] sm:$0xff]
  %v1343 = vld [vmem:[%s3 + $0x30] sm:$0xff]
  %v1344 = vld [vmem:[%s3 + $0x38] sm:$0xff]
  %v1345 = vld [vmem:[%s3 + $0x40] sm:$0xff]
  %v1346 = vld [vmem:[%s3 + $0x48] sm:$0xff]
  %v1347 = vld [vmem:[%s3 + $0x50] sm:$0xff]
  %v1348 = vld [vmem:[%s3 + $0x58] sm:$0xff]
  %v1349 = vld [vmem:[%s3 + $0x60] sm:$0xff]
  %v1350 = vld [vmem:[%s3 + $0x68] sm:$0xff]
  %v1351 = vld [vmem:[%s3 + $0x70] sm:$0xff]
  %v1352 = vld [vmem:[%s3 + $0x78] sm:$0xff]
  %v1353 = vmul.f32 %v1194, %v1337
  %v1354 = vmul.f32 %v1196, %v1338
  %v1355 = vmul.f32 %v1198, %v1339
  %v1356 = vmul.f32 %v1200, %v1340
  %v1357 = vmul.f32 %v1202, %v1341
  %v1358 = vmul.f32 %v1204, %v1342
  %v1359 = vmul.f32 %v1206, %v1343
  %v1360 = vmul.f32 %v1208, %v1344
  %v1361 = vmul.f32 %v1210, %v1345
  %v1362 = vmul.f32 %v1212, %v1346
  %v1363 = vmul.f32 %v1214, %v1347
  %v1364 = vmul.f32 %v1216, %v1348
  %v1365 = vmul.f32 %v1218, %v1349
  %v1366 = vmul.f32 %v1220, %v1350
  %v1367 = vmul.f32 %v1222, %v1351
  %v1368 = vmul.f32 %v1224, %v1352
  %v1369 = vmul.f32 %v1098, %v1321
  %v1370 = vmul.f32 %v1100, %v1322
  %v1371 = vmul.f32 %v1102, %v1323
  %v1372 = vmul.f32 %v1104, %v1324
  %v1373 = vmul.f32 %v1106, %v1325
  %v1374 = vmul.f32 %v1108, %v1326
  %v1375 = vmul.f32 %v1110, %v1327
  %v1376 = vmul.f32 %v1112, %v1328
  %v1377 = vmul.f32 %v1114, %v1329
  %v1378 = vmul.f32 %v1116, %v1330
  %v1379 = vmul.f32 %v1118, %v1331
  %v1380 = vmul.f32 %v1120, %v1332
  %v1381 = vmul.f32 %v1122, %v1333
  %v1382 = vmul.f32 %v1124, %v1334
  %v1383 = vmul.f32 %v1126, %v1335
  %v1384 = vmul.f32 %v1128, %v1336
  %v1385 = vadd.f32 %v1353, %v1369
  %v1386 = vadd.f32 %v1354, %v1370
  %v1387 = vadd.f32 %v1355, %v1371
  %v1388 = vadd.f32 %v1356, %v1372
  %v1389 = vadd.f32 %v1357, %v1373
  %v1390 = vadd.f32 %v1358, %v1374
  %v1391 = vadd.f32 %v1359, %v1375
  %v1392 = vadd.f32 %v1360, %v1376
  %v1393 = vadd.f32 %v1361, %v1377
  %v1394 = vadd.f32 %v1362, %v1378
  %v1395 = vadd.f32 %v1363, %v1379
  %v1396 = vadd.f32 %v1364, %v1380
  %v1397 = vadd.f32 %v1365, %v1381
  %v1398 = vadd.f32 %v1366, %v1382
  %v1399 = vadd.f32 %v1367, %v1383
  %v1400 = vadd.f32 %v1368, %v1384
  %v1401 = vtanh.pop %v1385
  %v1402 = vtanh.pop %v1386
  %v1403 = vtanh.pop %v1387
  %v1404 = vtanh.pop %v1388
  %v1405 = vtanh.pop %v1389
  %v1406 = vtanh.pop %v1390
  %v1407 = vtanh.pop %v1391
  %v1408 = vtanh.pop %v1392
  %v1409 = vtanh.pop %v1393
  %v1410 = vtanh.pop %v1394
  %v1411 = vtanh.pop %v1395
  %v1412 = vtanh.pop %v1396
  %v1413 = vtanh.pop %v1397
  %v1414 = vtanh.pop %v1398
  %v1415 = vtanh.pop %v1399
  %v1416 = vtanh.pop %v1400
  %v1417 = vmul.f32 %v1290, %v1401
  %v1418 = vmul.f32 %v1292, %v1402
  %v1419 = vmul.f32 %v1294, %v1403
  %v1420 = vmul.f32 %v1296, %v1404
  %v1421 = vmul.f32 %v1298, %v1405
  %v1422 = vmul.f32 %v1300, %v1406
  %v1423 = vmul.f32 %v1302, %v1407
  %v1424 = vmul.f32 %v1304, %v1408
  %v1425 = vmul.f32 %v1306, %v1409
  %v1426 = vmul.f32 %v1308, %v1410
  %v1427 = vmul.f32 %v1310, %v1411
  %v1428 = vmul.f32 %v1312, %v1412
  %v1429 = vmul.f32 %v1314, %v1413
  %v1430 = vmul.f32 %v1316, %v1414
  %v1431 = vmul.f32 %v1318, %v1415
  %v1432 = vmul.f32 %v1320, %v1416
  %1433 = vst [vmem:[%s4] sm:$0xff] %v1417
  %1434 = vst [vmem:[%s4 + $0x8] sm:$0xff] %v1418
  %1435 = vst [vmem:[%s4 + $0x10] sm:$0xff] %v1419
  %1436 = vst [vmem:[%s4 + $0x18] sm:$0xff] %v1420
  %1437 = vst [vmem:[%s4 + $0x20] sm:$0xff] %v1421
  %1438 = vst [vmem:[%s4 + $0x28] sm:$0xff] %v1422
  %1439 = vst [vmem:[%s4 + $0x30] sm:$0xff] %v1423
  %1440 = vst [vmem:[%s4 + $0x38] sm:$0xff] %v1424
  %1441 = vst [vmem:[%s4 + $0x40] sm:$0xff] %v1425
  %1442 = vst [vmem:[%s4 + $0x48] sm:$0xff] %v1426
  %1443 = vst [vmem:[%s4 + $0x50] sm:$0xff] %v1427
  %1444 = vst [vmem:[%s4 + $0x58] sm:$0xff] %v1428
  %1445 = vst [vmem:[%s4 + $0x60] sm:$0xff] %v1429
  %1446 = vst [vmem:[%s4 + $0x68] sm:$0xff] %v1430
  %1447 = vst [vmem:[%s4 + $0x70] sm:$0xff] %v1431
  %1448 = vst [vmem:[%s4 + $0x78] sm:$0xff] %v1432
  %1449 = vst [vmem:[%s5] sm:$0xff] %v1385
  %1450 = vst [vmem:[%s5 + $0x8] sm:$0xff] %v1386
  %1451 = vst [vmem:[%s5 + $0x10] sm:$0xff] %v1387
  %1452 = vst [vmem:[%s5 + $0x18] sm:$0xff] %v1388
  %1453 = vst [vmem:[%s5 + $0x20] sm:$0xff] %v1389
  %1454 = vst [vmem:[%s5 + $0x28] sm:$0xff] %v1390
  %1455 = vst [vmem:[%s5 + $0x30] sm:$0xff] %v1391
  %1456 = vst [vmem:[%s5 + $0x38] sm:$0xff] %v1392
  %1457 = vst [vmem:[%s5 + $0x40] sm:$0xff] %v1393
  %1458 = vst [vmem:[%s5 + $0x48] sm:$0xff] %v1394
  %1459 = vst [vmem:[%s5 + $0x50] sm:$0xff] %v1395
  %1460 = vst [vmem:[%s5 + $0x58] sm:$0xff] %v1396
  %1461 = vst [vmem:[%s5 + $0x60] sm:$0xff] %v1397
  %1462 = vst [vmem:[%s5 + $0x68] sm:$0xff] %v1398
  %1463 = vst [vmem:[%s5 + $0x70] sm:$0xff] %v1399
  %1464 = vst [vmem:[%s5 + $0x78] sm:$0xff] %v1400
  // Predicated region
  $region18: #{convlstm_cell_apply.1} parent=0 // pred_check
    _
  $region19: #{convlstm_cell_apply.1} parent=0 // pred_check_branch
    %1466 = sbr.rel (0) target = $region21
  $region20: #{convlstm_cell_apply.1} parent=0 // pred_region
    _
  $region21: #{convlstm_cell_apply.1} parent=0 // pred_fallthru
    _
  // Predicated region
  $region22: #{convlstm_cell_apply.1} parent=0 // pred_check
    _
  $region23: #{convlstm_cell_apply.1} parent=0 // pred_check_branch
    %1468 = sbr.rel (0) target = $region25
  $region24: #{convlstm_cell_apply.1} parent=0 // pred_region
    _
  $region25: #{convlstm_cell_apply.1} parent=0 // pred_fallthru
    _
  // Predicated region
  $region26: #{convlstm_cell_apply.1} parent=0 // pred_check
    _
  $region27: #{convlstm_cell_apply.1} parent=0 // pred_check_branch
    %1470 = sbr.rel (0) target = $region29
  $region28: #{convlstm_cell_apply.1} parent=0 // pred_region
    _
  $region29: #{convlstm_cell_apply.1} parent=0 // pred_fallthru
    _
  // Predicated region
  $region30: #{convlstm_cell_apply.1} parent=0 // pred_check
    _
  $region31: #{convlstm_cell_apply.1} parent=0 // pred_check_branch
    %1472 = sbr.rel (0) target = $region33
  $region32: #{convlstm_cell_apply.1} parent=0 // pred_region
    _
  $region33: #{convlstm_cell_apply.1} parent=0 // pred_fallthru
    _

</llo_original>
